<compile_context>
chip_gen: v7x
topology: tpu7x:2x2x1
jax: 0.10.0
libtpu: 0.0.40
codegen_flags: <defaults>
</compile_context>

<pallas_src>
import functools

import jax
import jax.numpy as jnp
from jax import lax
from jax.experimental import pallas as pl
from jax.experimental.pallas import tpu as pltpu


def attention_block_kernel(x_ref, wqkv_ref, bqkv_ref, wo_ref, bo_ref, o_ref,
                           *, C, H, W):
    HW = H * W
    x2d = x_ref[...]                                   # (C, HW), lane-dense

    # Fused Q/K/V 1x1 conv on the MXU: (3C, C) @ (C, HW) -> (3C, HW).
    qkv = jnp.dot(wqkv_ref[...], x2d, preferred_element_type=jnp.float32)
    qkv = qkv + bqkv_ref[...]                          # (3C, 1) bias broadcast

    q = qkv[0 * C:1 * C, :].reshape(C, H, W)
    k = qkv[1 * C:2 * C, :].reshape(C, H, W)
    v = qkv[2 * C:3 * C, :].reshape(C, H, W)

    # Per-channel attention scores: s[c] = q[c] @ k[c]^T, batched over C.
    s = lax.dot_general(q, k, (((2,), (2,)), ((0,), (0,))),
                        preferred_element_type=jnp.float32)   # (C, H, H)

    # Softmax over the last axis (kept in f32).
    s = s - jnp.max(s, axis=-1, keepdims=True)
    p = jnp.exp(s)
    p = p * pl.reciprocal(jnp.sum(p, axis=-1, keepdims=True), approx=False)

    # out[c] = p[c] @ v[c], batched over C.
    out = lax.dot_general(p, v, (((2,), (1,)), ((0,), (0,))),
                          preferred_element_type=jnp.float32)  # (C, H, W)

    # Final 1x1 conv, again as an MXU matmul in the lane-dense layout.
    out2d = out.reshape(C, HW)
    y = jnp.dot(wo_ref[...], out2d, preferred_element_type=jnp.float32)
    y = y + bo_ref[...]
    o_ref[...] = y.astype(o_ref.dtype)


def attention_block(x, params):
    B, C, H, W = x.shape
    HW = H * W
    wq, bq, wk, bk, wv, bv, wo, bo = params

    # Fuse the three projection convs into one (3C, C) matmul weight + bias.
    w_qkv = jnp.concatenate([wq, wk, wv], axis=0)               # (3C, C)
    b_qkv = jnp.concatenate([bq, bk, bv], axis=0).reshape(3 * C, 1)
    bo2 = bo.reshape(C, 1)

    # Lane-dense layout: last dim is H*W.
    x2d = x.reshape(B, C, HW)

    x_spec = pl.BlockSpec((None, C, HW), lambda b: (b, 0, 0))   # batch squeezed
    wqkv_spec = pl.BlockSpec((3 * C, C), lambda b: (0, 0))
    bqkv_spec = pl.BlockSpec((3 * C, 1), lambda b: (0, 0))
    wo_spec = pl.BlockSpec((C, C), lambda b: (0, 0))
    bo_spec = pl.BlockSpec((C, 1), lambda b: (0, 0))

    kernel = functools.partial(attention_block_kernel, C=C, H=H, W=W)

    y2d = pl.pallas_call(
        kernel,
        out_shape=jax.ShapeDtypeStruct((B, C, HW), x.dtype),
        grid_spec=pltpu.PrefetchScalarGridSpec(
            num_scalar_prefetch=0,
            grid=(B,),
            in_specs=[x_spec, wqkv_spec, bqkv_spec, wo_spec, bo_spec],
            out_specs=x_spec,
        ),
        compiler_params=pltpu.CompilerParams(
            dimension_semantics=("parallel",)),
    )(x2d, w_qkv, b_qkv, wo, bo2)

    return y2d.reshape(B, C, H, W)


def attention_block_reference(x, params):
    """Pure-JAX reference matching the PyTorch forward exactly."""
    wq, bq, wk, bk, wv, bv, wo, bo = params

    def conv1x1(inp, w, b):
        return (jnp.einsum('oc,bchw->bohw', w, inp,
                           precision=lax.Precision.HIGHEST)
                + b[None, :, None, None])

    q = conv1x1(x, wq, bq)
    k = conv1x1(x, wk, bk)
    v = conv1x1(x, wv, bv)
    attn = jnp.einsum('bchw,bcgw->bchg', q, k,
                      precision=lax.Precision.HIGHEST)
    attn = jax.nn.softmax(attn, axis=-1)
    out = jnp.einsum('bchg,bcgw->bchw', attn, v,
                     precision=lax.Precision.HIGHEST)
    return conv1x1(out, wo, bo)


if __name__ == "__main__":
    B, C, H, W = 2, 4, 16, 16
    key = jax.random.PRNGKey(0)
    keys = jax.random.split(key, 9)

    x = jax.random.normal(keys[0], (B, C, H, W), dtype=jnp.float32)

    # Deterministic parameter init (PyTorch Conv2d U(-1/sqrt(fan_in), +) style).
    bound = 1.0 / (C ** 0.5)
    params = []
    for i in range(4):
        w = jax.random.uniform(keys[1 + 2 * i], (C, C), jnp.float32, -bound, bound)
        b = jax.random.uniform(keys[2 + 2 * i], (C,), jnp.float32, -bound, bound)
        params.extend([w, b])
    params = tuple(params)

    y = attention_block(x, params)
    y = jax.block_until_ready(y)

    y_ref = attention_block_reference(x, params)
    assert y.shape == (B, C, H, W)
    # MXU matmuls may use reduced-precision passes for f32 inputs; allow a
    # slightly looser tolerance than a pure-f32 VPU reduction would need.
    assert jnp.allclose(y, y_ref, atol=1e-2, rtol=1e-2), \
        f"max abs err: {jnp.max(jnp.abs(y - y_ref))}"

    print("KERNEL_OK")
</pallas_src>

<mosaic_0001>
module attributes {stable_mosaic.version = 11 : i64} {
  func.func @attention_block_kernel(%arg0: i32, %arg1: memref<1x4x256xf32, #tpu.memory_space<vmem>>, %arg2: memref<12x4xf32, #tpu.memory_space<vmem>>, %arg3: memref<12x1xf32, #tpu.memory_space<vmem>>, %arg4: memref<4x4xf32, #tpu.memory_space<vmem>>, %arg5: memref<4x1xf32, #tpu.memory_space<vmem>>, %arg6: memref<1x4x256xf32, #tpu.memory_space<vmem>>) attributes {dimension_semantics = [#tpu.dimension_semantics<parallel>], iteration_bounds = array<i64: 2>, scalar_prefetch = 0 : i64, scratch_operands = 0 : i64, tpu.core_type = #tpu.core_type<tc>, window_params = [{transform_indices = @transform_0, window_bounds = array<i64: 1, 4, 256>}, {pipeline_mode = #tpu.pipeline_mode<synchronous>, transform_indices = @transform_1, window_bounds = array<i64: 12, 4>}, {pipeline_mode = #tpu.pipeline_mode<synchronous>, transform_indices = @transform_2, window_bounds = array<i64: 12, 1>}, {pipeline_mode = #tpu.pipeline_mode<synchronous>, transform_indices = @transform_3, window_bounds = array<i64: 4, 4>}, {pipeline_mode = #tpu.pipeline_mode<synchronous>, transform_indices = @transform_4, window_bounds = array<i64: 4, 1>}, {transform_indices = @transform_5, window_bounds = array<i64: 1, 4, 256>}]} {
    %c0 = arith.constant 0 : index
    %c0_0 = arith.constant 0 : index
    %c0_1 = arith.constant 0 : index
    %0 = vector.load %arg1[%c0, %c0_0, %c0_1] : memref<1x4x256xf32, #tpu.memory_space<vmem>>, vector<1x4x256xf32>
    %1 = vector.shape_cast %0 : vector<1x4x256xf32> to vector<4x256xf32>
    %c0_2 = arith.constant 0 : index
    %c0_3 = arith.constant 0 : index
    %2 = vector.load %arg2[%c0_2, %c0_3] : memref<12x4xf32, #tpu.memory_space<vmem>>, vector<12x4xf32>
    %cst = arith.constant dense<0.000000e+00> : vector<12x256xf32>
    %3 = tpu.matmul %2, %1, %cst {dimension_numbers = #tpu.dot_dimension_numbers<[1], [0], [0], [1], [0, 0, 1, 1], [], []>} : vector<12x4xf32>, vector<4x256xf32>, vector<12x256xf32> -> vector<12x256xf32>
    %c0_4 = arith.constant 0 : index
    %c0_5 = arith.constant 0 : index
    %4 = vector.load %arg3[%c0_4, %c0_5] : memref<12x1xf32, #tpu.memory_space<vmem>>, vector<12x1xf32>
    %5 = vector.broadcast %4 : vector<12x1xf32> to vector<12x256xf32>
    %6 = arith.addf %3, %5 : vector<12x256xf32>
    %7 = vector.extract_strided_slice %6 {offsets = [0, 0], sizes = [4, 256], strides = [1, 1]} : vector<12x256xf32> to vector<4x256xf32>
    %8 = vector.shape_cast %7 : vector<4x256xf32> to vector<4x16x16xf32>
    %9 = vector.extract_strided_slice %6 {offsets = [4, 0], sizes = [4, 256], strides = [1, 1]} : vector<12x256xf32> to vector<4x256xf32>
    %10 = vector.shape_cast %9 : vector<4x256xf32> to vector<4x16x16xf32>
    %11 = vector.extract_strided_slice %6 {offsets = [8, 0], sizes = [4, 256], strides = [1, 1]} : vector<12x256xf32> to vector<4x256xf32>
    %12 = vector.shape_cast %11 : vector<4x256xf32> to vector<4x16x16xf32>
    %cst_6 = arith.constant dense<0.000000e+00> : vector<4x16x16xf32>
    %13 = tpu.matmul %8, %10, %cst_6 {dimension_numbers = #tpu.dot_dimension_numbers<[2], [2], [1], [1], [0, 0, 0, 1, 1, 1], [0], [0]>} : vector<4x16x16xf32>, vector<4x16x16xf32>, vector<4x16x16xf32> -> vector<4x16x16xf32>
    %cst_7 = arith.constant dense<0xFF800000> : vector<4x16xf32>
    %14 = vector.multi_reduction <maximumf>, %13, %cst_7 [2] : vector<4x16x16xf32> to vector<4x16xf32>
    %15 = vector.shape_cast %14 : vector<4x16xf32> to vector<4x16x1xf32>
    %16 = vector.broadcast %15 : vector<4x16x1xf32> to vector<4x16x16xf32>
    %17 = arith.subf %13, %16 : vector<4x16x16xf32>
    %18 = math.exp %17 : vector<4x16x16xf32>
    %cst_8 = arith.constant dense<0.000000e+00> : vector<4x16xf32>
    %19 = vector.multi_reduction <add>, %18, %cst_8 [2] : vector<4x16x16xf32> to vector<4x16xf32>
    %20 = vector.shape_cast %19 : vector<4x16xf32> to vector<4x16x1xf32>
    %21 = tpu.reciprocal %20 : vector<4x16x1xf32> -> vector<4x16x1xf32>
    %22 = vector.broadcast %21 : vector<4x16x1xf32> to vector<4x16x16xf32>
    %23 = arith.mulf %18, %22 : vector<4x16x16xf32>
    %cst_9 = arith.constant dense<0.000000e+00> : vector<4x16x16xf32>
    %24 = tpu.matmul %23, %12, %cst_9 {dimension_numbers = #tpu.dot_dimension_numbers<[2], [1], [1], [2], [0, 0, 0, 1, 1, 2], [0], [0]>} : vector<4x16x16xf32>, vector<4x16x16xf32>, vector<4x16x16xf32> -> vector<4x16x16xf32>
    %25 = vector.shape_cast %24 : vector<4x16x16xf32> to vector<4x256xf32>
    %c0_10 = arith.constant 0 : index
    %c0_11 = arith.constant 0 : index
    %26 = vector.load %arg4[%c0_10, %c0_11] : memref<4x4xf32, #tpu.memory_space<vmem>>, vector<4x4xf32>
    %cst_12 = arith.constant dense<0.000000e+00> : vector<4x256xf32>
    %27 = tpu.matmul %26, %25, %cst_12 {dimension_numbers = #tpu.dot_dimension_numbers<[1], [0], [0], [1], [0, 0, 1, 1], [], []>} : vector<4x4xf32>, vector<4x256xf32>, vector<4x256xf32> -> vector<4x256xf32>
    %c0_13 = arith.constant 0 : index
    %c0_14 = arith.constant 0 : index
    %28 = vector.load %arg5[%c0_13, %c0_14] : memref<4x1xf32, #tpu.memory_space<vmem>>, vector<4x1xf32>
    %29 = vector.broadcast %28 : vector<4x1xf32> to vector<4x256xf32>
    %30 = arith.addf %27, %29 : vector<4x256xf32>
    %c0_15 = arith.constant 0 : index
    %c0_16 = arith.constant 0 : index
    %c0_17 = arith.constant 0 : index
    %31 = vector.load %arg6[%c0_15, %c0_16, %c0_17] : memref<1x4x256xf32, #tpu.memory_space<vmem>>, vector<1x4x256xf32>
    %32 = vector.shape_cast %31 : vector<1x4x256xf32> to vector<4x256xf32>
    %33 = vector.shape_cast %30 : vector<4x256xf32> to vector<1x4x256xf32>
    tpu.vector_store %arg6[%c0_15, %c0_16, %c0_17], %33 {strides = array<i32>} : memref<1x4x256xf32, #tpu.memory_space<vmem>>, vector<1x4x256xf32>,
    return
  }
  func.func @transform_0(%arg0: i32) -> (i32, i32, i32) {
    %c0_i32 = arith.constant 0 : i32
    %c0_i32_0 = arith.constant 0 : i32
    %c0_i32_1 = arith.constant 0 : i32
    return %arg0, %c0_i32, %c0_i32_0 : i32, i32, i32
  }
  func.func @transform_1(%arg0: i32) -> (i32, i32) {
    %c0_i32 = arith.constant 0 : i32
    %c0_i32_0 = arith.constant 0 : i32
    %c0_i32_1 = arith.constant 0 : i32
    return %c0_i32, %c0_i32_0 : i32, i32
  }
  func.func @transform_2(%arg0: i32) -> (i32, i32) {
    %c0_i32 = arith.constant 0 : i32
    %c0_i32_0 = arith.constant 0 : i32
    %c0_i32_1 = arith.constant 0 : i32
    return %c0_i32, %c0_i32_0 : i32, i32
  }
  func.func @transform_3(%arg0: i32) -> (i32, i32) {
    %c0_i32 = arith.constant 0 : i32
    %c0_i32_0 = arith.constant 0 : i32
    %c0_i32_1 = arith.constant 0 : i32
    return %c0_i32, %c0_i32_0 : i32, i32
  }
  func.func @transform_4(%arg0: i32) -> (i32, i32) {
    %c0_i32 = arith.constant 0 : i32
    %c0_i32_0 = arith.constant 0 : i32
    %c0_i32_1 = arith.constant 0 : i32
    return %c0_i32, %c0_i32_0 : i32, i32
  }
  func.func @transform_5(%arg0: i32) -> (i32, i32, i32) {
    %c0_i32 = arith.constant 0 : i32
    %c0_i32_0 = arith.constant 0 : i32
    %c0_i32_1 = arith.constant 0 : i32
    return %arg0, %c0_i32, %c0_i32_0 : i32, i32, i32
  }
}

</mosaic_0001>

<llo_original>
// kernel: tpu_custom_call.1
$region0: #{tpu_custom_call.1}
  #allocation0 [shape = 'u32[]', space=smem, size = 0x4, offset = 0x4, fixed_abs, tag = 'smem constant byte address 0x4 - core index']
  #allocation1 [shape = 'u32[144,128]{1,0:T(1,128)}', space=vmem, size = 0x12000, scoped, tag = 'internal scratch']
  %s0 = inlined_call_operand.vmem [shape: f32[2,4,256], index: 0, kind: input, shape index: {}]
  %s1 = inlined_call_operand.vmem [shape: f32[12,4], index: 1, kind: input, shape index: {}]
  %s2 = inlined_call_operand.vmem [shape: f32[12,1], index: 2, kind: input, shape index: {}]
  %s3 = inlined_call_operand.vmem [shape: f32[4,4], index: 3, kind: input, shape index: {}]
  %s4 = inlined_call_operand.vmem [shape: f32[4,1], index: 4, kind: input, shape index: {}]
  %s5 = inlined_call_operand.hbm [shape: f32[2,4,256], index: 5, kind: output, shape index: {}]
  %s6 = sld [smem:[#allocation0]]
  $region53: #{tpu_custom_call.1} parent=0
    _
  %s8 = ssub.s32 1, %s6
  %s9 = scalar_select 0, %s8, %s6
  $region1: #{tpu_custom_call.1} parent=0
    #allocation2 [shape = 'u8[8192]{0}', space=vmem, size = 0x2000, scoped, tag = 'output window, operand 0']
    #allocation3 [shape = 's32[2]{0}', space=sflag, size = 0x8, scoped, tag = 'scoped memory for tpu_custom_call.1']
    %10 = vsyncpa [#allocation3], 0
    %s11 = scalar_lea.sflag [#allocation3], 1
    %12 = vsyncpa %s11, 0
    loop: start=0, step=1, limit=4
    $region2: #{tpu_custom_call.1} parent=1 // loop_pre_header
      _
    $region3: #{tpu_custom_call.1} parent=1 // loop_header
      %s14 = sphi 0, %s18
      %p15 = scmp.ge.s32.totalorder %s14, 4
      %s24 = sphi 0, %s26
      %s27 = sphi 0, %s24
      %s28 = sphi 0, %s27
      %s44 = sphi 0, %s28
      %s48 = sphi 0, %s48
      %s50 = sphi 0, %s48
      %s51 = sphi 0, %s50
      %s65 = sphi 0, %s51
      %s69 = sphi 0, %s69
      %s71 = sphi 0, %s69
      %s72 = sphi 0, %s71
      %s86 = sphi 0, %s72
      %s90 = sphi 0, %s90
      %s92 = sphi 0, %s90
      %s93 = sphi 0, %s92
      %s107 = sphi 0, %s93
      %s111 = sphi 0, %s111
      %s113 = sphi 0, %s111
      %s114 = sphi 0, %s113
      %s128 = sphi 0, %s114
      %s134 = sphi 0, %s136
      %s137 = sphi 0, %s134
      %s138 = sphi 0, %s137
      %s154 = sphi 0, %s138
    $region4: #{tpu_custom_call.1} parent=1 // loop_header_branch
      %17 = sbr.rel (%p15) target = $region8
    $region5: #{tpu_custom_call.1} parent=1 // loop_body
      %s19 = ssub.s32 %s14, 1
      %s20 = ssub.s32 %s14, 2
      %s21 = sadd.s32 %s14, 1
      %s22 = ssub.s32 %s14, %s21
      %p23 = scmp.eq.s32.totalorder %s22, 0
      %s25 = sadd.s32 %s24, 1
      %s26 = scalar_select %p23, %s24, %s25
      %p29 = pneg %p23
      %p30 = scmp.eq.s32.totalorder %s14, 1
      %p31 = por %p29, %p30
      %p32 = scmp.ne.s32.totalorder %s24, %s27
      %p33 = scmp.eq.s32.totalorder %s14, 0
      %p34 = por %p32, %p33
      %p35 = scmp.ne.s32.totalorder %s24, %s27
      %p36 = scmp.eq.s32.totalorder %s19, 1
      %p37 = por %p35, %p36
      %p38 = scmp.ne.s32.totalorder %s27, %s28
      %p39 = scmp.eq.s32.totalorder %s19, 0
      %p40 = por %p38, %p39
      %p41 = scmp.ne.s32.totalorder %s27, %s28
      %p42 = scmp.eq.s32.totalorder %s20, 1
      %p43 = por %p41, %p42
      %p45 = scmp.ne.s32.totalorder %s28, %s44
      %p46 = scmp.eq.s32.totalorder %s20, 0
      %p47 = por %p45, %p46
      %s49 = sadd.s32 %s48, 1
      %p52 = scmp.eq.s32.totalorder %s14, 1
      %p53 = scmp.ne.s32.totalorder %s48, %s50
      %p54 = scmp.eq.s32.totalorder %s14, 0
      %p55 = por %p53, %p54
      %p56 = scmp.ne.s32.totalorder %s48, %s50
      %p57 = scmp.eq.s32.totalorder %s19, 1
      %p58 = por %p56, %p57
      %p59 = scmp.ne.s32.totalorder %s50, %s51
      %p60 = scmp.eq.s32.totalorder %s19, 0
      %p61 = por %p59, %p60
      %p62 = scmp.ne.s32.totalorder %s50, %s51
      %p63 = scmp.eq.s32.totalorder %s20, 1
      %p64 = por %p62, %p63
      %p66 = scmp.ne.s32.totalorder %s51, %s65
      %p67 = scmp.eq.s32.totalorder %s20, 0
      %p68 = por %p66, %p67
      %s70 = sadd.s32 %s69, 1
      %p73 = scmp.eq.s32.totalorder %s14, 1
      %p74 = scmp.ne.s32.totalorder %s69, %s71
      %p75 = scmp.eq.s32.totalorder %s14, 0
      %p76 = por %p74, %p75
      %p77 = scmp.ne.s32.totalorder %s69, %s71
      %p78 = scmp.eq.s32.totalorder %s19, 1
      %p79 = por %p77, %p78
      %p80 = scmp.ne.s32.totalorder %s71, %s72
      %p81 = scmp.eq.s32.totalorder %s19, 0
      %p82 = por %p80, %p81
      %p83 = scmp.ne.s32.totalorder %s71, %s72
      %p84 = scmp.eq.s32.totalorder %s20, 1
      %p85 = por %p83, %p84
      %p87 = scmp.ne.s32.totalorder %s72, %s86
      %p88 = scmp.eq.s32.totalorder %s20, 0
      %p89 = por %p87, %p88
      %s91 = sadd.s32 %s90, 1
      %p94 = scmp.eq.s32.totalorder %s14, 1
      %p95 = scmp.ne.s32.totalorder %s90, %s92
      %p96 = scmp.eq.s32.totalorder %s14, 0
      %p97 = por %p95, %p96
      %p98 = scmp.ne.s32.totalorder %s90, %s92
      %p99 = scmp.eq.s32.totalorder %s19, 1
      %p100 = por %p98, %p99
      %p101 = scmp.ne.s32.totalorder %s92, %s93
      %p102 = scmp.eq.s32.totalorder %s19, 0
      %p103 = por %p101, %p102
      %p104 = scmp.ne.s32.totalorder %s92, %s93
      %p105 = scmp.eq.s32.totalorder %s20, 1
      %p106 = por %p104, %p105
      %p108 = scmp.ne.s32.totalorder %s93, %s107
      %p109 = scmp.eq.s32.totalorder %s20, 0
      %p110 = por %p108, %p109
      %s112 = sadd.s32 %s111, 1
      %p115 = scmp.eq.s32.totalorder %s14, 1
      %p116 = scmp.ne.s32.totalorder %s111, %s113
      %p117 = scmp.eq.s32.totalorder %s14, 0
      %p118 = por %p116, %p117
      %p119 = scmp.ne.s32.totalorder %s111, %s113
      %p120 = scmp.eq.s32.totalorder %s19, 1
      %p121 = por %p119, %p120
      %p122 = scmp.ne.s32.totalorder %s113, %s114
      %p123 = scmp.eq.s32.totalorder %s19, 0
      %p124 = por %p122, %p123
      %p125 = scmp.ne.s32.totalorder %s113, %s114
      %p126 = scmp.eq.s32.totalorder %s20, 1
      %p127 = por %p125, %p126
      %p129 = scmp.ne.s32.totalorder %s114, %s128
      %p130 = scmp.eq.s32.totalorder %s20, 0
      %p131 = por %p129, %p130
      %s132 = ssub.s32 %s14, %s21
      %p133 = scmp.eq.s32.totalorder %s132, 0
      %s135 = sadd.s32 %s134, 1
      %s136 = scalar_select %p133, %s134, %s135
      %p139 = pneg %p133
      %p140 = scmp.eq.s32.totalorder %s14, 1
      %p141 = por %p139, %p140
      %p142 = scmp.ne.s32.totalorder %s134, %s137
      %p143 = scmp.eq.s32.totalorder %s14, 0
      %p144 = por %p142, %p143
      %p145 = scmp.ne.s32.totalorder %s134, %s137
      %p146 = scmp.eq.s32.totalorder %s19, 1
      %p147 = por %p145, %p146
      %p148 = scmp.ne.s32.totalorder %s137, %s138
      %p149 = scmp.eq.s32.totalorder %s19, 0
      %p150 = por %p148, %p149
      %p151 = scmp.ne.s32.totalorder %s137, %s138
      %p152 = scmp.eq.s32.totalorder %s20, 1
      %p153 = por %p151, %p152
      %p155 = scmp.ne.s32.totalorder %s138, %s154
      %p156 = scmp.eq.s32.totalorder %s20, 0
      %p157 = por %p155, %p156
      %p158 = scmp.le.s32.totalorder 1, %s14
      %p159 = scmp.lt.s32.totalorder %s14, 3
      %p160 = pnand %p158, %p159
      %p161 = pneg %p160
      // Predicated region
      $region9: #{tpu_custom_call.1} parent=5 // pred_check
        _
      $region10: #{tpu_custom_call.1} parent=5 // pred_check_branch
        %163 = sbr.rel (%p160) target = $region12
      $region11: #{tpu_custom_call.1} parent=5 // pred_region
        %s164 = ssub.s32 %s14, 1
        // Predicated region
        $region13: #{tpu_custom_call.1} parent=11 // pred_check
          %p165 = pneg %p61
        $region14: #{tpu_custom_call.1} parent=11 // pred_check_branch
          %167 = sbr.rel (%p165) target = $region16
        $region15: #{tpu_custom_call.1} parent=11 // pred_region
          _
        $region16: #{tpu_custom_call.1} parent=11 // pred_fallthru
          _
        // Predicated region
        $region17: #{tpu_custom_call.1} parent=11 // pred_check
          %p168 = pneg %p82
        $region18: #{tpu_custom_call.1} parent=11 // pred_check_branch
          %170 = sbr.rel (%p168) target = $region20
        $region19: #{tpu_custom_call.1} parent=11 // pred_region
          _
        $region20: #{tpu_custom_call.1} parent=11 // pred_fallthru
          _
        // Predicated region
        $region21: #{tpu_custom_call.1} parent=11 // pred_check
          %p171 = pneg %p103
        $region22: #{tpu_custom_call.1} parent=11 // pred_check_branch
          %173 = sbr.rel (%p171) target = $region24
        $region23: #{tpu_custom_call.1} parent=11 // pred_region
          _
        $region24: #{tpu_custom_call.1} parent=11 // pred_fallthru
          _
        // Predicated region
        $region25: #{tpu_custom_call.1} parent=11 // pred_check
          %p174 = pneg %p124
        $region26: #{tpu_custom_call.1} parent=11 // pred_check_branch
          %176 = sbr.rel (%p174) target = $region28
        $region27: #{tpu_custom_call.1} parent=11 // pred_region
          _
        $region28: #{tpu_custom_call.1} parent=11 // pred_fallthru
          _
      $region12: #{tpu_custom_call.1} parent=5 // pred_fallthru
        _
      %p177 = scmp.lt.s32.totalorder %s14, 2
      // Predicated region
      $region29: #{tpu_custom_call.1} parent=5 // pred_check
        %p178 = pneg %p177
      $region30: #{tpu_custom_call.1} parent=5 // pred_check_branch
        %180 = sbr.rel (%p178) target = $region32
      $region31: #{tpu_custom_call.1} parent=5 // pred_region
        // Predicated region
        $region33: #{tpu_custom_call.1} parent=31 // pred_check
          %p181 = pneg %p34
        $region34: #{tpu_custom_call.1} parent=31 // pred_check_branch
          %183 = sbr.rel (%p181) target = $region36
        $region35: #{tpu_custom_call.1} parent=31 // pred_region
          %p184 = scmp.lt.s32.totalorder %s14, 1
          %s185 = scalar_select %p184, %s14, 1
          %s186 = smul.addr %s185, 2
          %s187 = smul.addr %s186, 4
          %s188 = scalar_lea.vmem %s0, %s187
        $region36: #{tpu_custom_call.1} parent=31 // pred_fallthru
          _
      $region32: #{tpu_custom_call.1} parent=5 // pred_fallthru
        _
      %p189 = scmp.le.s32.totalorder 1, %s14
      %p190 = scmp.lt.s32.totalorder %s14, 3
      %p191 = pnand %p189, %p190
      %p192 = pneg %p191
      // Predicated region
      $region37: #{tpu_custom_call.1} parent=5 // pred_check
        _
      $region38: #{tpu_custom_call.1} parent=5 // pred_check_branch
        %194 = sbr.rel (%p191) target = $region40
      $region39: #{tpu_custom_call.1} parent=5 // pred_region
        %s195 = ssub.s32 %s14, 1
        %p196 = scmp.lt.s32.totalorder %s19, 1
        %s197 = scalar_select %p196, %s19, 1
        %s198 = smul.addr %s197, 2
        %s199 = smul.addr %s198, 4
        %s200 = scalar_lea.vmem %s0, %s199
        %p201 = pneg %p40
        %p202 = pneg %p37
        %p203 = pneg %p61
        %p204 = pneg %p58
        %p205 = pneg %p82
        %p206 = pneg %p79
        %p207 = pneg %p103
        %p208 = pneg %p100
        %p209 = pneg %p124
        %p210 = pneg %p121
        %p211 = pneg %p150
        %p212 = pneg %p147
        %s213 = sand.u32 %s137, 1
        %s214 = scalar_lea.sflag [#allocation3], %s213
        %s215 = sand.u32 %s137, 1
        %s216 = smul.addr %s215, 8
        %s217 = scalar_lea.vmem [#allocation2], %s216
        %p218 = scmp.lt.s32.totalorder %s19, 1
        %s219 = scalar_select %p218, %s19, 1
        %s220 = smul.addr %s219, 2
        %s221 = smul.addr %s220, 4
        %s222 = scalar_lea.vmem %s0, %s221
        %v223 = vld [vmem:[%s222] sm:$0xff]
        %v224 = vld [vmem:[%s1] sm:$0xff]
        %v225 = vld [vmem:[%s1 + $0x8] sm:$0xf]
        %v226 = vld [vmem:[%s2] sm:$0xff]
        %v227 = vld [vmem:[%s2 + $0x8] sm:$0xf]
        %229 = vset.pattern.permute.xlu0 0
        %230 = vperm.xlu0 %229, %v226
        %v231 = vpop.permute.xlu0 %230
        %234 = vset.pattern.permute.xlu0 0
        %235 = vperm.xlu0 %234, %v227
        %v236 = vpop.permute.xlu0 %235
        %v239 = vcombine.high %v223, %v223
        %vm240 = vcmask 31744
        %v242 = vsel %vm240, %v224, 0
        %v245 = vsel %vm240, %v225, 0
        %vm247 = vcmask 1043456
        %v248 = vsel %vm247, %v223, 0
        %v250 = vsel %vm247, %v239, 0
        %252 = vmatprep.subr.mxu0 %v250
        %253 = vmatpush1.msra.mxu0 %v248
        %254 = vmatprep.subr.mxu0 0.0
        %255 = vmatpush1.msra.mxu0 0.0
        %256 = vmatprep.subr.mxu0 0.0
        %257 = vmatpush1.msra.mxu0 0.0
        %258 = vmatprep.subr.mxu0 0.0
        %259 = vmatpush1.msra.mxu0 0.0
        %260 = vmatprep.subr.mxu0 0.0
        %261 = vmatpush1.msra.mxu0 0.0
        %262 = vmatprep.subr.mxu0 0.0
        %263 = vmatpush1.msra.mxu0 0.0
        %264 = vmatprep.subr.mxu0 0.0
        %265 = vmatpush1.msra.mxu0 0.0
        %266 = vmatprep.subr.mxu0 0.0
        %267 = vmatpush1.msra.mxu0 0.0
        %268 = vmatprep.subr.mxu0 0.0
        %269 = vmatpush1.msra.mxu0 0.0
        %270 = vmatprep.subr.mxu0 0.0
        %271 = vmatpush1.msra.mxu0 0.0
        %272 = vmatprep.subr.mxu0 0.0
        %273 = vmatpush1.msra.mxu0 0.0
        %274 = vmatprep.subr.mxu0 0.0
        %275 = vmatpush1.msra.mxu0 0.0
        %276 = vmatprep.subr.mxu0 0.0
        %277 = vmatpush1.msra.mxu0 0.0
        %278 = vmatprep.subr.mxu0 0.0
        %279 = vmatpush1.msra.mxu0 0.0
        %280 = vmatprep.subr.mxu0 0.0
        %281 = vmatpush1.msra.mxu0 0.0
        %282 = vmatprep.subr.mxu0 0.0
        %283 = vmatpush1.msra.mxu0 0.0
        %284 = vmatprep.subr.mxu0 0.0
        %285 = vmatpush1.msra.mxu0 0.0
        %286 = vmatprep.subr.mxu0 0.0
        %287 = vmatpush1.msra.mxu0 0.0
        %288 = vmatprep.subr.mxu0 0.0
        %289 = vmatpush1.msra.mxu0 0.0
        %290 = vmatprep.subr.mxu0 0.0
        %291 = vmatpush1.msra.mxu0 0.0
        %292 = vmatprep.subr.mxu0 0.0
        %293 = vmatpush1.msra.mxu0 0.0
        %294 = vmatprep.subr.mxu0 0.0
        %295 = vmatpush1.msra.mxu0 0.0
        %296 = vmatprep.subr.mxu0 0.0
        %297 = vmatpush1.msra.mxu0 0.0
        %298 = vmatprep.subr.mxu0 0.0
        %299 = vmatpush1.msra.mxu0 0.0
        %300 = vmatprep.subr.mxu0 0.0
        %301 = vmatpush1.msra.mxu0 0.0
        %302 = vmatprep.subr.mxu0 0.0
        %303 = vmatpush1.msra.mxu0 0.0
        %304 = vmatprep.subr.mxu0 0.0
        %305 = vmatpush1.msra.mxu0 0.0
        %306 = vmatprep.subr.mxu0 0.0
        %307 = vmatpush1.msra.mxu0 0.0
        %308 = vmatprep.subr.mxu0 0.0
        %309 = vmatpush1.msra.mxu0 0.0
        %310 = vmatprep.subr.mxu0 0.0
        %311 = vmatpush1.msra.mxu0 0.0
        %312 = vmatprep.subr.mxu0 0.0
        %313 = vmatpush1.msra.mxu0 0.0
        %314 = vmatprep.subr.mxu0 0.0
        %315 = vmatpush1.msra.mxu0 0.0
        %316 = vmatprep.mubr.f32.mxu0 0.0
        %317 = vmatmul.mubr.f32.gmra.mrb[0].mxu0 %v242
        %v318 = vpop.f32.mrb[0].mxu0
        %v319 = vadd.f32 %v231, %v318
        %v320 = vpop.f32.mrb[0].mxu0
        %v321 = vadd.f32 %v231, %v320
        %322 = vmatprep.mubr.f32.mxu0 0.0
        %323 = vmatmul.mubr.f32.gmra.mrb[0].mxu0 %v245
        %v324 = vpop.f32.mrb[0].mxu0
        %v325 = vadd.f32 %v236, %v324
        %v326 = vpop.f32.mrb[0].mxu0
        %v327 = vadd.f32 %v236, %v326
        %328 = vdwg.mxu0
        %330 = vrot.lane.b32.xlu0 %v319, 112
        %v331 = vpop.permute.xlu0 %330
        %333 = vrot.lane.b32.xlu0 %v319, 96
        %v334 = vpop.permute.xlu0 %333
        %336 = vrot.lane.b32.xlu0 %v319, 80
        %v337 = vpop.permute.xlu0 %336
        %339 = vrot.lane.b32.xlu0 %v319, 64
        %v340 = vpop.permute.xlu0 %339
        %342 = vrot.lane.b32.xlu0 %v319, 48
        %v343 = vpop.permute.xlu0 %342
        %345 = vrot.lane.b32.xlu0 %v319, 32
        %v346 = vpop.permute.xlu0 %345
        %348 = vrot.lane.b32.xlu0 %v319, 16
        %v349 = vpop.permute.xlu0 %348
        %352 = vrot.lane.b32.xlu0 %v321, 112
        %v353 = vpop.permute.xlu0 %352
        %355 = vrot.lane.b32.xlu0 %v321, 96
        %v356 = vpop.permute.xlu0 %355
        %358 = vrot.lane.b32.xlu0 %v321, 80
        %v359 = vpop.permute.xlu0 %358
        %361 = vrot.lane.b32.xlu0 %v321, 64
        %v362 = vpop.permute.xlu0 %361
        %364 = vrot.lane.b32.xlu0 %v321, 48
        %v365 = vpop.permute.xlu0 %364
        %367 = vrot.lane.b32.xlu0 %v321, 32
        %v368 = vpop.permute.xlu0 %367
        %370 = vrot.lane.b32.xlu0 %v321, 16
        %v371 = vpop.permute.xlu0 %370
        %v373 = vcombine.low %v319, %v334
        %v375 = vunpack.c.l.s4 1983009808
        %v376 = vunpack.c.0.s8 %v375
        %v377 = vlaneseq
        %v378 = vshrl.u32 %v377, 7
        %v379 = vsub.s32 %v376, %v378
        %v380 = vrot.slane %v373, %v379
        %v381 = vcombine.low %v331, %v337
        %v383 = vunpack.c.l.s4 1983009808
        %v384 = vunpack.c.0.s8 %v383
        %v385 = vlaneseq
        %v386 = vshrl.u32 %v385, 7
        %v387 = vsub.s32 %v384, %v386
        %v388 = vrot.slane %v381, %v387
        %v389 = vcombine.low %v340, %v346
        %v391 = vunpack.c.l.s4 1983009808
        %v392 = vunpack.c.0.s8 %v391
        %v393 = vlaneseq
        %v394 = vshrl.u32 %v393, 7
        %v395 = vsub.s32 %v392, %v394
        %v396 = vrot.slane %v389, %v395
        %v397 = vcombine.low %v343, %v349
        %v399 = vunpack.c.l.s4 1983009808
        %v400 = vunpack.c.0.s8 %v399
        %v401 = vlaneseq
        %v402 = vshrl.u32 %v401, 7
        %v403 = vsub.s32 %v400, %v402
        %v404 = vrot.slane %v397, %v403
        %v405 = vcombine.low %v380, %v388
        %v406 = vcombine.high %v380, %v388
        %v408 = vunpack.c.l.s4 1934713408
        %v409 = vunpack.c.0.s8 %v408
        %v410 = vlaneseq
        %v411 = vshrl.u32 %v410, 7
        %v412 = vsub.s32 %v409, %v411
        %v413 = vrot.slane %v405, %v412
        %v415 = vunpack.c.l.s4 1934713408
        %v416 = vunpack.c.0.s8 %v415
        %v417 = vlaneseq
        %v418 = vshrl.u32 %v417, 7
        %v419 = vsub.s32 %v416, %v418
        %v420 = vrot.slane %v406, %v419
        %v421 = vcombine.low %v396, %v404
        %v422 = vcombine.high %v396, %v404
        %v424 = vunpack.c.l.s4 1934713408
        %v425 = vunpack.c.0.s8 %v424
        %v426 = vlaneseq
        %v427 = vshrl.u32 %v426, 7
        %v428 = vsub.s32 %v425, %v427
        %v429 = vrot.slane %v421, %v428
        %v431 = vunpack.c.l.s4 1934713408
        %v432 = vunpack.c.0.s8 %v431
        %v433 = vlaneseq
        %v434 = vshrl.u32 %v433, 7
        %v435 = vsub.s32 %v432, %v434
        %v436 = vrot.slane %v422, %v435
        %v437 = vcombine.low %v413, %v429
        %v438 = vcombine.high %v413, %v429
        %v439 = vcombine.low %v420, %v436
        %v440 = vcombine.high %v420, %v436
        %v441 = vcombine.low %v321, %v356
        %v443 = vunpack.c.l.s4 1983009808
        %v444 = vunpack.c.0.s8 %v443
        %v445 = vlaneseq
        %v446 = vshrl.u32 %v445, 7
        %v447 = vsub.s32 %v444, %v446
        %v448 = vrot.slane %v441, %v447
        %v449 = vcombine.low %v353, %v359
        %v451 = vunpack.c.l.s4 1983009808
        %v452 = vunpack.c.0.s8 %v451
        %v453 = vlaneseq
        %v454 = vshrl.u32 %v453, 7
        %v455 = vsub.s32 %v452, %v454
        %v456 = vrot.slane %v449, %v455
        %v457 = vcombine.low %v362, %v368
        %v459 = vunpack.c.l.s4 1983009808
        %v460 = vunpack.c.0.s8 %v459
        %v461 = vlaneseq
        %v462 = vshrl.u32 %v461, 7
        %v463 = vsub.s32 %v460, %v462
        %v464 = vrot.slane %v457, %v463
        %v465 = vcombine.low %v365, %v371
        %v467 = vunpack.c.l.s4 1983009808
        %v468 = vunpack.c.0.s8 %v467
        %v469 = vlaneseq
        %v470 = vshrl.u32 %v469, 7
        %v471 = vsub.s32 %v468, %v470
        %v472 = vrot.slane %v465, %v471
        %v473 = vcombine.low %v448, %v456
        %v474 = vcombine.high %v448, %v456
        %v476 = vunpack.c.l.s4 1934713408
        %v477 = vunpack.c.0.s8 %v476
        %v478 = vlaneseq
        %v479 = vshrl.u32 %v478, 7
        %v480 = vsub.s32 %v477, %v479
        %v481 = vrot.slane %v473, %v480
        %v483 = vunpack.c.l.s4 1934713408
        %v484 = vunpack.c.0.s8 %v483
        %v485 = vlaneseq
        %v486 = vshrl.u32 %v485, 7
        %v487 = vsub.s32 %v484, %v486
        %v488 = vrot.slane %v474, %v487
        %v489 = vcombine.low %v464, %v472
        %v490 = vcombine.high %v464, %v472
        %v492 = vunpack.c.l.s4 1934713408
        %v493 = vunpack.c.0.s8 %v492
        %v494 = vlaneseq
        %v495 = vshrl.u32 %v494, 7
        %v496 = vsub.s32 %v493, %v495
        %v497 = vrot.slane %v489, %v496
        %v499 = vunpack.c.l.s4 1934713408
        %v500 = vunpack.c.0.s8 %v499
        %v501 = vlaneseq
        %v502 = vshrl.u32 %v501, 7
        %v503 = vsub.s32 %v500, %v502
        %v504 = vrot.slane %v490, %v503
        %v505 = vcombine.low %v481, %v497
        %v506 = vcombine.high %v481, %v497
        %v507 = vcombine.low %v488, %v504
        %v508 = vcombine.high %v488, %v504
        %v509 = vrot.slane %v319, 4
        %v510 = vrot.slane %v331, 4
        %v511 = vrot.slane %v334, 4
        %v512 = vrot.slane %v337, 4
        %v513 = vrot.slane %v340, 4
        %v514 = vrot.slane %v343, 4
        %v515 = vrot.slane %v346, 4
        %v516 = vrot.slane %v349, 4
        %v517 = vrot.slane %v321, 4
        %v518 = vrot.slane %v353, 4
        %v519 = vrot.slane %v356, 4
        %v520 = vrot.slane %v359, 4
        %v521 = vrot.slane %v362, 4
        %v522 = vrot.slane %v365, 4
        %v523 = vrot.slane %v368, 4
        %v524 = vrot.slane %v371, 4
        %v541 = vcombine.low %v509, %v511
        %v543 = vunpack.c.l.s4 1983009808
        %v544 = vunpack.c.0.s8 %v543
        %v545 = vlaneseq
        %v546 = vshrl.u32 %v545, 7
        %v547 = vsub.s32 %v544, %v546
        %v548 = vrot.slane %v541, %v547
        %v549 = vcombine.low %v510, %v512
        %v551 = vunpack.c.l.s4 1983009808
        %v552 = vunpack.c.0.s8 %v551
        %v553 = vlaneseq
        %v554 = vshrl.u32 %v553, 7
        %v555 = vsub.s32 %v552, %v554
        %v556 = vrot.slane %v549, %v555
        %v557 = vcombine.low %v513, %v515
        %v559 = vunpack.c.l.s4 1983009808
        %v560 = vunpack.c.0.s8 %v559
        %v561 = vlaneseq
        %v562 = vshrl.u32 %v561, 7
        %v563 = vsub.s32 %v560, %v562
        %v564 = vrot.slane %v557, %v563
        %v565 = vcombine.low %v514, %v516
        %v567 = vunpack.c.l.s4 1983009808
        %v568 = vunpack.c.0.s8 %v567
        %v569 = vlaneseq
        %v570 = vshrl.u32 %v569, 7
        %v571 = vsub.s32 %v568, %v570
        %v572 = vrot.slane %v565, %v571
        %v573 = vcombine.low %v548, %v556
        %v574 = vcombine.high %v548, %v556
        %v576 = vunpack.c.l.s4 1934713408
        %v577 = vunpack.c.0.s8 %v576
        %v578 = vlaneseq
        %v579 = vshrl.u32 %v578, 7
        %v580 = vsub.s32 %v577, %v579
        %v581 = vrot.slane %v573, %v580
        %v583 = vunpack.c.l.s4 1934713408
        %v584 = vunpack.c.0.s8 %v583
        %v585 = vlaneseq
        %v586 = vshrl.u32 %v585, 7
        %v587 = vsub.s32 %v584, %v586
        %v588 = vrot.slane %v574, %v587
        %v589 = vcombine.low %v564, %v572
        %v590 = vcombine.high %v564, %v572
        %v592 = vunpack.c.l.s4 1934713408
        %v593 = vunpack.c.0.s8 %v592
        %v594 = vlaneseq
        %v595 = vshrl.u32 %v594, 7
        %v596 = vsub.s32 %v593, %v595
        %v597 = vrot.slane %v589, %v596
        %v599 = vunpack.c.l.s4 1934713408
        %v600 = vunpack.c.0.s8 %v599
        %v601 = vlaneseq
        %v602 = vshrl.u32 %v601, 7
        %v603 = vsub.s32 %v600, %v602
        %v604 = vrot.slane %v590, %v603
        %v605 = vcombine.low %v581, %v597
        %v606 = vcombine.high %v581, %v597
        %v607 = vcombine.low %v588, %v604
        %v608 = vcombine.high %v588, %v604
        %v609 = vcombine.low %v517, %v519
        %v611 = vunpack.c.l.s4 1983009808
        %v612 = vunpack.c.0.s8 %v611
        %v613 = vlaneseq
        %v614 = vshrl.u32 %v613, 7
        %v615 = vsub.s32 %v612, %v614
        %v616 = vrot.slane %v609, %v615
        %v617 = vcombine.low %v518, %v520
        %v619 = vunpack.c.l.s4 1983009808
        %v620 = vunpack.c.0.s8 %v619
        %v621 = vlaneseq
        %v622 = vshrl.u32 %v621, 7
        %v623 = vsub.s32 %v620, %v622
        %v624 = vrot.slane %v617, %v623
        %v625 = vcombine.low %v521, %v523
        %v627 = vunpack.c.l.s4 1983009808
        %v628 = vunpack.c.0.s8 %v627
        %v629 = vlaneseq
        %v630 = vshrl.u32 %v629, 7
        %v631 = vsub.s32 %v628, %v630
        %v632 = vrot.slane %v625, %v631
        %v633 = vcombine.low %v522, %v524
        %v635 = vunpack.c.l.s4 1983009808
        %v636 = vunpack.c.0.s8 %v635
        %v637 = vlaneseq
        %v638 = vshrl.u32 %v637, 7
        %v639 = vsub.s32 %v636, %v638
        %v640 = vrot.slane %v633, %v639
        %v641 = vcombine.low %v616, %v624
        %v642 = vcombine.high %v616, %v624
        %v644 = vunpack.c.l.s4 1934713408
        %v645 = vunpack.c.0.s8 %v644
        %v646 = vlaneseq
        %v647 = vshrl.u32 %v646, 7
        %v648 = vsub.s32 %v645, %v647
        %v649 = vrot.slane %v641, %v648
        %v651 = vunpack.c.l.s4 1934713408
        %v652 = vunpack.c.0.s8 %v651
        %v653 = vlaneseq
        %v654 = vshrl.u32 %v653, 7
        %v655 = vsub.s32 %v652, %v654
        %v656 = vrot.slane %v642, %v655
        %v657 = vcombine.low %v632, %v640
        %v658 = vcombine.high %v632, %v640
        %v660 = vunpack.c.l.s4 1934713408
        %v661 = vunpack.c.0.s8 %v660
        %v662 = vlaneseq
        %v663 = vshrl.u32 %v662, 7
        %v664 = vsub.s32 %v661, %v663
        %v665 = vrot.slane %v657, %v664
        %v667 = vunpack.c.l.s4 1934713408
        %v668 = vunpack.c.0.s8 %v667
        %v669 = vlaneseq
        %v670 = vshrl.u32 %v669, 7
        %v671 = vsub.s32 %v668, %v670
        %v672 = vrot.slane %v658, %v671
        %v673 = vcombine.low %v649, %v665
        %v674 = vcombine.high %v649, %v665
        %v675 = vcombine.low %v656, %v672
        %v676 = vcombine.high %v656, %v672
        %678 = vrot.lane.b32.xlu0 %v325, 112
        %v679 = vpop.permute.xlu0 %678
        %681 = vrot.lane.b32.xlu0 %v325, 96
        %v682 = vpop.permute.xlu0 %681
        %684 = vrot.lane.b32.xlu0 %v325, 80
        %v685 = vpop.permute.xlu0 %684
        %687 = vrot.lane.b32.xlu0 %v325, 64
        %v688 = vpop.permute.xlu0 %687
        %690 = vrot.lane.b32.xlu0 %v325, 48
        %v691 = vpop.permute.xlu0 %690
        %693 = vrot.lane.b32.xlu0 %v325, 32
        %v694 = vpop.permute.xlu0 %693
        %696 = vrot.lane.b32.xlu0 %v325, 16
        %v697 = vpop.permute.xlu0 %696
        %700 = vrot.lane.b32.xlu0 %v327, 112
        %v701 = vpop.permute.xlu0 %700
        %703 = vrot.lane.b32.xlu0 %v327, 96
        %v704 = vpop.permute.xlu0 %703
        %706 = vrot.lane.b32.xlu0 %v327, 80
        %v707 = vpop.permute.xlu0 %706
        %709 = vrot.lane.b32.xlu0 %v327, 64
        %v710 = vpop.permute.xlu0 %709
        %712 = vrot.lane.b32.xlu0 %v327, 48
        %v713 = vpop.permute.xlu0 %712
        %715 = vrot.lane.b32.xlu0 %v327, 32
        %v716 = vpop.permute.xlu0 %715
        %718 = vrot.lane.b32.xlu0 %v327, 16
        %v719 = vpop.permute.xlu0 %718
        %v721 = vcombine.low %v325, %v682
        %v723 = vunpack.c.l.s4 1983009808
        %v724 = vunpack.c.0.s8 %v723
        %v725 = vlaneseq
        %v726 = vshrl.u32 %v725, 7
        %v727 = vsub.s32 %v724, %v726
        %v728 = vrot.slane %v721, %v727
        %v729 = vcombine.low %v679, %v685
        %v731 = vunpack.c.l.s4 1983009808
        %v732 = vunpack.c.0.s8 %v731
        %v733 = vlaneseq
        %v734 = vshrl.u32 %v733, 7
        %v735 = vsub.s32 %v732, %v734
        %v736 = vrot.slane %v729, %v735
        %v737 = vcombine.low %v688, %v694
        %v739 = vunpack.c.l.s4 1983009808
        %v740 = vunpack.c.0.s8 %v739
        %v741 = vlaneseq
        %v742 = vshrl.u32 %v741, 7
        %v743 = vsub.s32 %v740, %v742
        %v744 = vrot.slane %v737, %v743
        %v745 = vcombine.low %v691, %v697
        %v747 = vunpack.c.l.s4 1983009808
        %v748 = vunpack.c.0.s8 %v747
        %v749 = vlaneseq
        %v750 = vshrl.u32 %v749, 7
        %v751 = vsub.s32 %v748, %v750
        %v752 = vrot.slane %v745, %v751
        %v753 = vcombine.low %v728, %v736
        %v754 = vcombine.high %v728, %v736
        %v756 = vunpack.c.l.s4 1934713408
        %v757 = vunpack.c.0.s8 %v756
        %v758 = vlaneseq
        %v759 = vshrl.u32 %v758, 7
        %v760 = vsub.s32 %v757, %v759
        %v761 = vrot.slane %v753, %v760
        %v763 = vunpack.c.l.s4 1934713408
        %v764 = vunpack.c.0.s8 %v763
        %v765 = vlaneseq
        %v766 = vshrl.u32 %v765, 7
        %v767 = vsub.s32 %v764, %v766
        %v768 = vrot.slane %v754, %v767
        %v769 = vcombine.low %v744, %v752
        %v770 = vcombine.high %v744, %v752
        %v772 = vunpack.c.l.s4 1934713408
        %v773 = vunpack.c.0.s8 %v772
        %v774 = vlaneseq
        %v775 = vshrl.u32 %v774, 7
        %v776 = vsub.s32 %v773, %v775
        %v777 = vrot.slane %v769, %v776
        %v779 = vunpack.c.l.s4 1934713408
        %v780 = vunpack.c.0.s8 %v779
        %v781 = vlaneseq
        %v782 = vshrl.u32 %v781, 7
        %v783 = vsub.s32 %v780, %v782
        %v784 = vrot.slane %v770, %v783
        %v785 = vcombine.low %v761, %v777
        %v786 = vcombine.high %v761, %v777
        %v787 = vcombine.low %v768, %v784
        %v788 = vcombine.high %v768, %v784
        %v789 = vcombine.low %v327, %v704
        %v791 = vunpack.c.l.s4 1983009808
        %v792 = vunpack.c.0.s8 %v791
        %v793 = vlaneseq
        %v794 = vshrl.u32 %v793, 7
        %v795 = vsub.s32 %v792, %v794
        %v796 = vrot.slane %v789, %v795
        %v797 = vcombine.low %v701, %v707
        %v799 = vunpack.c.l.s4 1983009808
        %v800 = vunpack.c.0.s8 %v799
        %v801 = vlaneseq
        %v802 = vshrl.u32 %v801, 7
        %v803 = vsub.s32 %v800, %v802
        %v804 = vrot.slane %v797, %v803
        %v805 = vcombine.low %v710, %v716
        %v807 = vunpack.c.l.s4 1983009808
        %v808 = vunpack.c.0.s8 %v807
        %v809 = vlaneseq
        %v810 = vshrl.u32 %v809, 7
        %v811 = vsub.s32 %v808, %v810
        %v812 = vrot.slane %v805, %v811
        %v813 = vcombine.low %v713, %v719
        %v815 = vunpack.c.l.s4 1983009808
        %v816 = vunpack.c.0.s8 %v815
        %v817 = vlaneseq
        %v818 = vshrl.u32 %v817, 7
        %v819 = vsub.s32 %v816, %v818
        %v820 = vrot.slane %v813, %v819
        %v821 = vcombine.low %v796, %v804
        %v822 = vcombine.high %v796, %v804
        %v824 = vunpack.c.l.s4 1934713408
        %v825 = vunpack.c.0.s8 %v824
        %v826 = vlaneseq
        %v827 = vshrl.u32 %v826, 7
        %v828 = vsub.s32 %v825, %v827
        %v829 = vrot.slane %v821, %v828
        %v831 = vunpack.c.l.s4 1934713408
        %v832 = vunpack.c.0.s8 %v831
        %v833 = vlaneseq
        %v834 = vshrl.u32 %v833, 7
        %v835 = vsub.s32 %v832, %v834
        %v836 = vrot.slane %v822, %v835
        %v837 = vcombine.low %v812, %v820
        %v838 = vcombine.high %v812, %v820
        %v840 = vunpack.c.l.s4 1934713408
        %v841 = vunpack.c.0.s8 %v840
        %v842 = vlaneseq
        %v843 = vshrl.u32 %v842, 7
        %v844 = vsub.s32 %v841, %v843
        %v845 = vrot.slane %v837, %v844
        %v847 = vunpack.c.l.s4 1934713408
        %v848 = vunpack.c.0.s8 %v847
        %v849 = vlaneseq
        %v850 = vshrl.u32 %v849, 7
        %v851 = vsub.s32 %v848, %v850
        %v852 = vrot.slane %v838, %v851
        %v853 = vcombine.low %v829, %v845
        %v854 = vcombine.high %v829, %v845
        %v855 = vcombine.low %v836, %v852
        %v856 = vcombine.high %v836, %v852
        %vm857 = vcmask 130048
        %v859 = vsel %vm857, %v437, 0
        %v862 = vsel %vm857, %v505, 0
        %v865 = vsel %vm857, %v605, 0
        %v868 = vsel %vm857, %v673, 0
        %870 = vmatprep.subr.mxu0 0.0
        %871 = vmatpush1.xpose.msra.mxu0 %v865
        %872 = vmatprep.subr.mxu0 0.0
        %873 = vmatpush1.xpose.msra.mxu0 %v868
        %874 = vmatprep.subr.mxu0 0.0
        %875 = vmatpush1.xpose.msra.mxu0 0.0
        %876 = vmatprep.subr.mxu0 0.0
        %877 = vmatpush1.xpose.msra.mxu0 0.0
        %878 = vmatprep.subr.mxu0 0.0
        %879 = vmatpush1.xpose.msra.mxu0 0.0
        %880 = vmatprep.subr.mxu0 0.0
        %881 = vmatpush1.xpose.msra.mxu0 0.0
        %882 = vmatprep.subr.mxu0 0.0
        %883 = vmatpush1.xpose.msra.mxu0 0.0
        %884 = vmatprep.subr.mxu0 0.0
        %885 = vmatpush1.xpose.msra.mxu0 0.0
        %886 = vmatprep.subr.mxu0 0.0
        %887 = vmatpush1.xpose.msra.mxu0 0.0
        %888 = vmatprep.subr.mxu0 0.0
        %889 = vmatpush1.xpose.msra.mxu0 0.0
        %890 = vmatprep.subr.mxu0 0.0
        %891 = vmatpush1.xpose.msra.mxu0 0.0
        %892 = vmatprep.subr.mxu0 0.0
        %893 = vmatpush1.xpose.msra.mxu0 0.0
        %894 = vmatprep.subr.mxu0 0.0
        %895 = vmatpush1.xpose.msra.mxu0 0.0
        %896 = vmatprep.subr.mxu0 0.0
        %897 = vmatpush1.xpose.msra.mxu0 0.0
        %898 = vmatprep.subr.mxu0 0.0
        %899 = vmatpush1.xpose.msra.mxu0 0.0
        %900 = vmatprep.subr.mxu0 0.0
        %901 = vmatpush1.xpose.msra.mxu0 0.0
        %902 = vmatprep.subr.mxu0 0.0
        %903 = vmatpush1.xpose.msra.mxu0 0.0
        %904 = vmatprep.subr.mxu0 0.0
        %905 = vmatpush1.xpose.msra.mxu0 0.0
        %906 = vmatprep.subr.mxu0 0.0
        %907 = vmatpush1.xpose.msra.mxu0 0.0
        %908 = vmatprep.subr.mxu0 0.0
        %909 = vmatpush1.xpose.msra.mxu0 0.0
        %910 = vmatprep.subr.mxu0 0.0
        %911 = vmatpush1.xpose.msra.mxu0 0.0
        %912 = vmatprep.subr.mxu0 0.0
        %913 = vmatpush1.xpose.msra.mxu0 0.0
        %914 = vmatprep.subr.mxu0 0.0
        %915 = vmatpush1.xpose.msra.mxu0 0.0
        %916 = vmatprep.subr.mxu0 0.0
        %917 = vmatpush1.xpose.msra.mxu0 0.0
        %918 = vmatprep.subr.mxu0 0.0
        %919 = vmatpush1.xpose.msra.mxu0 0.0
        %920 = vmatprep.subr.mxu0 0.0
        %921 = vmatpush1.xpose.msra.mxu0 0.0
        %922 = vmatprep.subr.mxu0 0.0
        %923 = vmatpush1.xpose.msra.mxu0 0.0
        %924 = vmatprep.subr.mxu0 0.0
        %925 = vmatpush1.xpose.msra.mxu0 0.0
        %926 = vmatprep.subr.mxu0 0.0
        %927 = vmatpush1.xpose.msra.mxu0 0.0
        %928 = vmatprep.subr.mxu0 0.0
        %929 = vmatpush1.xpose.msra.mxu0 0.0
        %930 = vmatprep.subr.mxu0 0.0
        %931 = vmatpush1.xpose.msra.mxu0 0.0
        %932 = vmatprep.subr.mxu0 0.0
        %933 = vmatpush1.xpose.msra.mxu0 0.0
        %934 = vmatprep.mubr.f32.mxu0 0.0
        %935 = vmatmul.mubr.f32.gmra.mrb[0].mxu0 %v859
        %v936 = vpop.f32.mrb[0].mxu0
        %v937 = vadd.f32 0.0, %v936
        %v938 = vpop.f32.mrb[0].mxu0
        %939 = vmatprep.mubr.f32.mxu0 0.0
        %940 = vmatmul.mubr.f32.gmra.mrb[0].mxu0 %v862
        %v941 = vpop.f32.mrb[0].mxu0
        %v942 = vadd.f32 0.0, %v941
        %v943 = vpop.f32.mrb[0].mxu0
        %944 = vdwg.mxu0
        %v946 = vsel %vm857, %v438, 0
        %v949 = vsel %vm857, %v506, 0
        %v952 = vsel %vm857, %v606, 0
        %v955 = vsel %vm857, %v674, 0
        %957 = vmatprep.subr.mxu0 0.0
        %958 = vmatpush1.xpose.msra.mxu0 %v952
        %959 = vmatprep.subr.mxu0 0.0
        %960 = vmatpush1.xpose.msra.mxu0 %v955
        %961 = vmatprep.subr.mxu0 0.0
        %962 = vmatpush1.xpose.msra.mxu0 0.0
        %963 = vmatprep.subr.mxu0 0.0
        %964 = vmatpush1.xpose.msra.mxu0 0.0
        %965 = vmatprep.subr.mxu0 0.0
        %966 = vmatpush1.xpose.msra.mxu0 0.0
        %967 = vmatprep.subr.mxu0 0.0
        %968 = vmatpush1.xpose.msra.mxu0 0.0
        %969 = vmatprep.subr.mxu0 0.0
        %970 = vmatpush1.xpose.msra.mxu0 0.0
        %971 = vmatprep.subr.mxu0 0.0
        %972 = vmatpush1.xpose.msra.mxu0 0.0
        %973 = vmatprep.subr.mxu0 0.0
        %974 = vmatpush1.xpose.msra.mxu0 0.0
        %975 = vmatprep.subr.mxu0 0.0
        %976 = vmatpush1.xpose.msra.mxu0 0.0
        %977 = vmatprep.subr.mxu0 0.0
        %978 = vmatpush1.xpose.msra.mxu0 0.0
        %979 = vmatprep.subr.mxu0 0.0
        %980 = vmatpush1.xpose.msra.mxu0 0.0
        %981 = vmatprep.subr.mxu0 0.0
        %982 = vmatpush1.xpose.msra.mxu0 0.0
        %983 = vmatprep.subr.mxu0 0.0
        %984 = vmatpush1.xpose.msra.mxu0 0.0
        %985 = vmatprep.subr.mxu0 0.0
        %986 = vmatpush1.xpose.msra.mxu0 0.0
        %987 = vmatprep.subr.mxu0 0.0
        %988 = vmatpush1.xpose.msra.mxu0 0.0
        %989 = vmatprep.subr.mxu0 0.0
        %990 = vmatpush1.xpose.msra.mxu0 0.0
        %991 = vmatprep.subr.mxu0 0.0
        %992 = vmatpush1.xpose.msra.mxu0 0.0
        %993 = vmatprep.subr.mxu0 0.0
        %994 = vmatpush1.xpose.msra.mxu0 0.0
        %995 = vmatprep.subr.mxu0 0.0
        %996 = vmatpush1.xpose.msra.mxu0 0.0
        %997 = vmatprep.subr.mxu0 0.0
        %998 = vmatpush1.xpose.msra.mxu0 0.0
        %999 = vmatprep.subr.mxu0 0.0
        %1000 = vmatpush1.xpose.msra.mxu0 0.0
        %1001 = vmatprep.subr.mxu0 0.0
        %1002 = vmatpush1.xpose.msra.mxu0 0.0
        %1003 = vmatprep.subr.mxu0 0.0
        %1004 = vmatpush1.xpose.msra.mxu0 0.0
        %1005 = vmatprep.subr.mxu0 0.0
        %1006 = vmatpush1.xpose.msra.mxu0 0.0
        %1007 = vmatprep.subr.mxu0 0.0
        %1008 = vmatpush1.xpose.msra.mxu0 0.0
        %1009 = vmatprep.subr.mxu0 0.0
        %1010 = vmatpush1.xpose.msra.mxu0 0.0
        %1011 = vmatprep.subr.mxu0 0.0
        %1012 = vmatpush1.xpose.msra.mxu0 0.0
        %1013 = vmatprep.subr.mxu0 0.0
        %1014 = vmatpush1.xpose.msra.mxu0 0.0
        %1015 = vmatprep.subr.mxu0 0.0
        %1016 = vmatpush1.xpose.msra.mxu0 0.0
        %1017 = vmatprep.subr.mxu0 0.0
        %1018 = vmatpush1.xpose.msra.mxu0 0.0
        %1019 = vmatprep.subr.mxu0 0.0
        %1020 = vmatpush1.xpose.msra.mxu0 0.0
        %1021 = vmatprep.mubr.f32.mxu0 0.0
        %1022 = vmatmul.mubr.f32.gmra.mrb[0].mxu0 %v946
        %v1023 = vpop.f32.mrb[0].mxu0
        %v1024 = vadd.f32 0.0, %v1023
        %v1025 = vpop.f32.mrb[0].mxu0
        %1026 = vmatprep.mubr.f32.mxu0 0.0
        %1027 = vmatmul.mubr.f32.gmra.mrb[0].mxu0 %v949
        %v1028 = vpop.f32.mrb[0].mxu0
        %v1029 = vadd.f32 0.0, %v1028
        %v1030 = vpop.f32.mrb[0].mxu0
        %1031 = vdwg.mxu0
        %v1033 = vsel %vm857, %v439, 0
        %v1036 = vsel %vm857, %v507, 0
        %v1039 = vsel %vm857, %v607, 0
        %v1042 = vsel %vm857, %v675, 0
        %1044 = vmatprep.subr.mxu0 0.0
        %1045 = vmatpush1.xpose.msra.mxu0 %v1039
        %1046 = vmatprep.subr.mxu0 0.0
        %1047 = vmatpush1.xpose.msra.mxu0 %v1042
        %1048 = vmatprep.subr.mxu0 0.0
        %1049 = vmatpush1.xpose.msra.mxu0 0.0
        %1050 = vmatprep.subr.mxu0 0.0
        %1051 = vmatpush1.xpose.msra.mxu0 0.0
        %1052 = vmatprep.subr.mxu0 0.0
        %1053 = vmatpush1.xpose.msra.mxu0 0.0
        %1054 = vmatprep.subr.mxu0 0.0
        %1055 = vmatpush1.xpose.msra.mxu0 0.0
        %1056 = vmatprep.subr.mxu0 0.0
        %1057 = vmatpush1.xpose.msra.mxu0 0.0
        %1058 = vmatprep.subr.mxu0 0.0
        %1059 = vmatpush1.xpose.msra.mxu0 0.0
        %1060 = vmatprep.subr.mxu0 0.0
        %1061 = vmatpush1.xpose.msra.mxu0 0.0
        %1062 = vmatprep.subr.mxu0 0.0
        %1063 = vmatpush1.xpose.msra.mxu0 0.0
        %1064 = vmatprep.subr.mxu0 0.0
        %1065 = vmatpush1.xpose.msra.mxu0 0.0
        %1066 = vmatprep.subr.mxu0 0.0
        %1067 = vmatpush1.xpose.msra.mxu0 0.0
        %1068 = vmatprep.subr.mxu0 0.0
        %1069 = vmatpush1.xpose.msra.mxu0 0.0
        %1070 = vmatprep.subr.mxu0 0.0
        %1071 = vmatpush1.xpose.msra.mxu0 0.0
        %1072 = vmatprep.subr.mxu0 0.0
        %1073 = vmatpush1.xpose.msra.mxu0 0.0
        %1074 = vmatprep.subr.mxu0 0.0
        %1075 = vmatpush1.xpose.msra.mxu0 0.0
        %1076 = vmatprep.subr.mxu0 0.0
        %1077 = vmatpush1.xpose.msra.mxu0 0.0
        %1078 = vmatprep.subr.mxu0 0.0
        %1079 = vmatpush1.xpose.msra.mxu0 0.0
        %1080 = vmatprep.subr.mxu0 0.0
        %1081 = vmatpush1.xpose.msra.mxu0 0.0
        %1082 = vmatprep.subr.mxu0 0.0
        %1083 = vmatpush1.xpose.msra.mxu0 0.0
        %1084 = vmatprep.subr.mxu0 0.0
        %1085 = vmatpush1.xpose.msra.mxu0 0.0
        %1086 = vmatprep.subr.mxu0 0.0
        %1087 = vmatpush1.xpose.msra.mxu0 0.0
        %1088 = vmatprep.subr.mxu0 0.0
        %1089 = vmatpush1.xpose.msra.mxu0 0.0
        %1090 = vmatprep.subr.mxu0 0.0
        %1091 = vmatpush1.xpose.msra.mxu0 0.0
        %1092 = vmatprep.subr.mxu0 0.0
        %1093 = vmatpush1.xpose.msra.mxu0 0.0
        %1094 = vmatprep.subr.mxu0 0.0
        %1095 = vmatpush1.xpose.msra.mxu0 0.0
        %1096 = vmatprep.subr.mxu0 0.0
        %1097 = vmatpush1.xpose.msra.mxu0 0.0
        %1098 = vmatprep.subr.mxu0 0.0
        %1099 = vmatpush1.xpose.msra.mxu0 0.0
        %1100 = vmatprep.subr.mxu0 0.0
        %1101 = vmatpush1.xpose.msra.mxu0 0.0
        %1102 = vmatprep.subr.mxu0 0.0
        %1103 = vmatpush1.xpose.msra.mxu0 0.0
        %1104 = vmatprep.subr.mxu0 0.0
        %1105 = vmatpush1.xpose.msra.mxu0 0.0
        %1106 = vmatprep.subr.mxu0 0.0
        %1107 = vmatpush1.xpose.msra.mxu0 0.0
        %1108 = vmatprep.mubr.f32.mxu0 0.0
        %1109 = vmatmul.mubr.f32.gmra.mrb[0].mxu0 %v1033
        %v1110 = vpop.f32.mrb[0].mxu0
        %v1111 = vadd.f32 0.0, %v1110
        %v1112 = vpop.f32.mrb[0].mxu0
        %1113 = vmatprep.mubr.f32.mxu0 0.0
        %1114 = vmatmul.mubr.f32.gmra.mrb[0].mxu0 %v1036
        %v1115 = vpop.f32.mrb[0].mxu0
        %v1116 = vadd.f32 0.0, %v1115
        %v1117 = vpop.f32.mrb[0].mxu0
        %1118 = vdwg.mxu0
        %v1120 = vsel %vm857, %v440, 0
        %v1123 = vsel %vm857, %v508, 0
        %v1126 = vsel %vm857, %v608, 0
        %v1129 = vsel %vm857, %v676, 0
        %1131 = vmatprep.subr.mxu0 0.0
        %1132 = vmatpush1.xpose.msra.mxu0 %v1126
        %1133 = vmatprep.subr.mxu0 0.0
        %1134 = vmatpush1.xpose.msra.mxu0 %v1129
        %1135 = vmatprep.subr.mxu0 0.0
        %1136 = vmatpush1.xpose.msra.mxu0 0.0
        %1137 = vmatprep.subr.mxu0 0.0
        %1138 = vmatpush1.xpose.msra.mxu0 0.0
        %1139 = vmatprep.subr.mxu0 0.0
        %1140 = vmatpush1.xpose.msra.mxu0 0.0
        %1141 = vmatprep.subr.mxu0 0.0
        %1142 = vmatpush1.xpose.msra.mxu0 0.0
        %1143 = vmatprep.subr.mxu0 0.0
        %1144 = vmatpush1.xpose.msra.mxu0 0.0
        %1145 = vmatprep.subr.mxu0 0.0
        %1146 = vmatpush1.xpose.msra.mxu0 0.0
        %1147 = vmatprep.subr.mxu0 0.0
        %1148 = vmatpush1.xpose.msra.mxu0 0.0
        %1149 = vmatprep.subr.mxu0 0.0
        %1150 = vmatpush1.xpose.msra.mxu0 0.0
        %1151 = vmatprep.subr.mxu0 0.0
        %1152 = vmatpush1.xpose.msra.mxu0 0.0
        %1153 = vmatprep.subr.mxu0 0.0
        %1154 = vmatpush1.xpose.msra.mxu0 0.0
        %1155 = vmatprep.subr.mxu0 0.0
        %1156 = vmatpush1.xpose.msra.mxu0 0.0
        %1157 = vmatprep.subr.mxu0 0.0
        %1158 = vmatpush1.xpose.msra.mxu0 0.0
        %1159 = vmatprep.subr.mxu0 0.0
        %1160 = vmatpush1.xpose.msra.mxu0 0.0
        %1161 = vmatprep.subr.mxu0 0.0
        %1162 = vmatpush1.xpose.msra.mxu0 0.0
        %1163 = vmatprep.subr.mxu0 0.0
        %1164 = vmatpush1.xpose.msra.mxu0 0.0
        %1165 = vmatprep.subr.mxu0 0.0
        %1166 = vmatpush1.xpose.msra.mxu0 0.0
        %1167 = vmatprep.subr.mxu0 0.0
        %1168 = vmatpush1.xpose.msra.mxu0 0.0
        %1169 = vmatprep.subr.mxu0 0.0
        %1170 = vmatpush1.xpose.msra.mxu0 0.0
        %1171 = vmatprep.subr.mxu0 0.0
        %1172 = vmatpush1.xpose.msra.mxu0 0.0
        %1173 = vmatprep.subr.mxu0 0.0
        %1174 = vmatpush1.xpose.msra.mxu0 0.0
        %1175 = vmatprep.subr.mxu0 0.0
        %1176 = vmatpush1.xpose.msra.mxu0 0.0
        %1177 = vmatprep.subr.mxu0 0.0
        %1178 = vmatpush1.xpose.msra.mxu0 0.0
        %1179 = vmatprep.subr.mxu0 0.0
        %1180 = vmatpush1.xpose.msra.mxu0 0.0
        %1181 = vmatprep.subr.mxu0 0.0
        %1182 = vmatpush1.xpose.msra.mxu0 0.0
        %1183 = vmatprep.subr.mxu0 0.0
        %1184 = vmatpush1.xpose.msra.mxu0 0.0
        %1185 = vmatprep.subr.mxu0 0.0
        %1186 = vmatpush1.xpose.msra.mxu0 0.0
        %1187 = vmatprep.subr.mxu0 0.0
        %1188 = vmatpush1.xpose.msra.mxu0 0.0
        %1189 = vmatprep.subr.mxu0 0.0
        %1190 = vmatpush1.xpose.msra.mxu0 0.0
        %1191 = vmatprep.subr.mxu0 0.0
        %1192 = vmatpush1.xpose.msra.mxu0 0.0
        %1193 = vmatprep.subr.mxu0 0.0
        %1194 = vmatpush1.xpose.msra.mxu0 0.0
        %1195 = vmatprep.mubr.f32.mxu0 0.0
        %1196 = vmatmul.mubr.f32.gmra.mrb[0].mxu0 %v1120
        %v1197 = vpop.f32.mrb[0].mxu0
        %v1198 = vadd.f32 0.0, %v1197
        %v1199 = vpop.f32.mrb[0].mxu0
        %1200 = vmatprep.mubr.f32.mxu0 0.0
        %1201 = vmatmul.mubr.f32.gmra.mrb[0].mxu0 %v1123
        %v1202 = vpop.f32.mrb[0].mxu0
        %v1203 = vadd.f32 0.0, %v1202
        %v1204 = vpop.f32.mrb[0].mxu0
        %1205 = vdwg.mxu0
        %v1206 = vsel %vm857, %v937, -inf
        %1207 = vmax.xlane.f32.xlu0 %v1206
        %v1208 = vpop.xlane.xlu0 %1207
        %v1209 = vsel %vm857, %v942, -inf
        %1210 = vmax.xlane.f32.xlu0 %v1209
        %v1211 = vpop.xlane.xlu0 %1210
        %v1212 = vsel %vm857, %v1024, -inf
        %1213 = vmax.xlane.f32.xlu0 %v1212
        %v1214 = vpop.xlane.xlu0 %1213
        %v1215 = vsel %vm857, %v1029, -inf
        %1216 = vmax.xlane.f32.xlu0 %v1215
        %v1217 = vpop.xlane.xlu0 %1216
        %v1218 = vsel %vm857, %v1111, -inf
        %1219 = vmax.xlane.f32.xlu0 %v1218
        %v1220 = vpop.xlane.xlu0 %1219
        %v1221 = vsel %vm857, %v1116, -inf
        %1222 = vmax.xlane.f32.xlu0 %v1221
        %v1223 = vpop.xlane.xlu0 %1222
        %v1224 = vsel %vm857, %v1198, -inf
        %1225 = vmax.xlane.f32.xlu0 %v1224
        %v1226 = vpop.xlane.xlu0 %1225
        %v1227 = vsel %vm857, %v1203, -inf
        %1228 = vmax.xlane.f32.xlu0 %v1227
        %v1229 = vpop.xlane.xlu0 %1228
        %v1230 = vsub.f32 %v937, %v1208
        %v1231 = vsub.f32 %v942, %v1211
        %v1232 = vsub.f32 %v1024, %v1214
        %v1233 = vsub.f32 %v1029, %v1217
        %v1234 = vsub.f32 %v1111, %v1220
        %v1235 = vsub.f32 %v1116, %v1223
        %v1236 = vsub.f32 %v1198, %v1226
        %v1237 = vsub.f32 %v1203, %v1229
        %v1238 = vmul.f32 %v1230, 1.442695
        %v1239 = vpow.pop %v1238
        %v1240 = vmul.f32 %v1231, 1.442695
        %v1241 = vpow.pop %v1240
        %v1242 = vmul.f32 %v1232, 1.442695
        %v1243 = vpow.pop %v1242
        %v1244 = vmul.f32 %v1233, 1.442695
        %v1245 = vpow.pop %v1244
        %v1246 = vmul.f32 %v1234, 1.442695
        %v1247 = vpow.pop %v1246
        %v1248 = vmul.f32 %v1235, 1.442695
        %v1249 = vpow.pop %v1248
        %v1250 = vmul.f32 %v1236, 1.442695
        %v1251 = vpow.pop %v1250
        %v1252 = vmul.f32 %v1237, 1.442695
        %v1253 = vpow.pop %v1252
        %v1254 = vsel %vm857, %v1239, 0.0
        %1255 = vadd.xlane.f32.xlu0 %v1254
        %v1256 = vpop.xlane.xlu0 %1255
        %v1257 = vsel %vm857, %v1241, 0.0
        %1258 = vadd.xlane.f32.xlu0 %v1257
        %v1259 = vpop.xlane.xlu0 %1258
        %v1260 = vsel %vm857, %v1243, 0.0
        %1261 = vadd.xlane.f32.xlu0 %v1260
        %v1262 = vpop.xlane.xlu0 %1261
        %v1263 = vsel %vm857, %v1245, 0.0
        %1264 = vadd.xlane.f32.xlu0 %v1263
        %v1265 = vpop.xlane.xlu0 %1264
        %v1266 = vsel %vm857, %v1247, 0.0
        %1267 = vadd.xlane.f32.xlu0 %v1266
        %v1268 = vpop.xlane.xlu0 %1267
        %v1269 = vsel %vm857, %v1249, 0.0
        %1270 = vadd.xlane.f32.xlu0 %v1269
        %v1271 = vpop.xlane.xlu0 %1270
        %v1272 = vsel %vm857, %v1251, 0.0
        %1273 = vadd.xlane.f32.xlu0 %v1272
        %v1274 = vpop.xlane.xlu0 %1273
        %v1275 = vsel %vm857, %v1253, 0.0
        %1276 = vadd.xlane.f32.xlu0 %v1275
        %v1277 = vpop.xlane.xlu0 %1276
        %v1278 = vrcp.pop %v1256
        %v1279 = vrcp.pop %v1259
        %v1280 = vrcp.pop %v1262
        %v1281 = vrcp.pop %v1265
        %v1282 = vrcp.pop %v1268
        %v1283 = vrcp.pop %v1271
        %v1284 = vrcp.pop %v1274
        %v1285 = vrcp.pop %v1277
        %v1286 = vmul.f32 %v1239, %v1278
        %v1287 = vmul.f32 %v1241, %v1279
        %v1288 = vmul.f32 %v1243, %v1280
        %v1289 = vmul.f32 %v1245, %v1281
        %v1290 = vmul.f32 %v1247, %v1282
        %v1291 = vmul.f32 %v1249, %v1283
        %v1292 = vmul.f32 %v1251, %v1284
        %v1293 = vmul.f32 %v1253, %v1285
        %v1295 = vsel %vm857, %v1286, 0
        %v1298 = vsel %vm857, %v1287, 0
        %1300 = vmatprep.subr.mxu0 0.0
        %1301 = vmatpush1.msra.mxu0 %v785
        %1302 = vmatprep.subr.mxu0 0.0
        %1303 = vmatpush1.msra.mxu0 %v853
        %1304 = vmatprep.subr.mxu0 0.0
        %1305 = vmatpush1.msra.mxu0 0.0
        %1306 = vmatprep.subr.mxu0 0.0
        %1307 = vmatpush1.msra.mxu0 0.0
        %1308 = vmatprep.subr.mxu0 0.0
        %1309 = vmatpush1.msra.mxu0 0.0
        %1310 = vmatprep.subr.mxu0 0.0
        %1311 = vmatpush1.msra.mxu0 0.0
        %1312 = vmatprep.subr.mxu0 0.0
        %1313 = vmatpush1.msra.mxu0 0.0
        %1314 = vmatprep.subr.mxu0 0.0
        %1315 = vmatpush1.msra.mxu0 0.0
        %1316 = vmatprep.subr.mxu0 0.0
        %1317 = vmatpush1.msra.mxu0 0.0
        %1318 = vmatprep.subr.mxu0 0.0
        %1319 = vmatpush1.msra.mxu0 0.0
        %1320 = vmatprep.subr.mxu0 0.0
        %1321 = vmatpush1.msra.mxu0 0.0
        %1322 = vmatprep.subr.mxu0 0.0
        %1323 = vmatpush1.msra.mxu0 0.0
        %1324 = vmatprep.subr.mxu0 0.0
        %1325 = vmatpush1.msra.mxu0 0.0
        %1326 = vmatprep.subr.mxu0 0.0
        %1327 = vmatpush1.msra.mxu0 0.0
        %1328 = vmatprep.subr.mxu0 0.0
        %1329 = vmatpush1.msra.mxu0 0.0
        %1330 = vmatprep.subr.mxu0 0.0
        %1331 = vmatpush1.msra.mxu0 0.0
        %1332 = vmatprep.subr.mxu0 0.0
        %1333 = vmatpush1.msra.mxu0 0.0
        %1334 = vmatprep.subr.mxu0 0.0
        %1335 = vmatpush1.msra.mxu0 0.0
        %1336 = vmatprep.subr.mxu0 0.0
        %1337 = vmatpush1.msra.mxu0 0.0
        %1338 = vmatprep.subr.mxu0 0.0
        %1339 = vmatpush1.msra.mxu0 0.0
        %1340 = vmatprep.subr.mxu0 0.0
        %1341 = vmatpush1.msra.mxu0 0.0
        %1342 = vmatprep.subr.mxu0 0.0
        %1343 = vmatpush1.msra.mxu0 0.0
        %1344 = vmatprep.subr.mxu0 0.0
        %1345 = vmatpush1.msra.mxu0 0.0
        %1346 = vmatprep.subr.mxu0 0.0
        %1347 = vmatpush1.msra.mxu0 0.0
        %1348 = vmatprep.subr.mxu0 0.0
        %1349 = vmatpush1.msra.mxu0 0.0
        %1350 = vmatprep.subr.mxu0 0.0
        %1351 = vmatpush1.msra.mxu0 0.0
        %1352 = vmatprep.subr.mxu0 0.0
        %1353 = vmatpush1.msra.mxu0 0.0
        %1354 = vmatprep.subr.mxu0 0.0
        %1355 = vmatpush1.msra.mxu0 0.0
        %1356 = vmatprep.subr.mxu0 0.0
        %1357 = vmatpush1.msra.mxu0 0.0
        %1358 = vmatprep.subr.mxu0 0.0
        %1359 = vmatpush1.msra.mxu0 0.0
        %1360 = vmatprep.subr.mxu0 0.0
        %1361 = vmatpush1.msra.mxu0 0.0
        %1362 = vmatprep.subr.mxu0 0.0
        %1363 = vmatpush1.msra.mxu0 0.0
        %1364 = vmatprep.mubr.f32.mxu0 0.0
        %1365 = vmatmul.mubr.f32.gmra.mrb[0].mxu0 %v1295
        %v1366 = vpop.f32.mrb[0].mxu0
        %v1367 = vadd.f32 0.0, %v1366
        %v1368 = vpop.f32.mrb[0].mxu0
        %1369 = vmatprep.mubr.f32.mxu0 0.0
        %1370 = vmatmul.mubr.f32.gmra.mrb[0].mxu0 %v1298
        %v1371 = vpop.f32.mrb[0].mxu0
        %v1372 = vadd.f32 0.0, %v1371
        %v1373 = vpop.f32.mrb[0].mxu0
        %1374 = vdwg.mxu0
        %v1376 = vsel %vm857, %v1288, 0
        %v1379 = vsel %vm857, %v1289, 0
        %1381 = vmatprep.subr.mxu0 0.0
        %1382 = vmatpush1.msra.mxu0 %v786
        %1383 = vmatprep.subr.mxu0 0.0
        %1384 = vmatpush1.msra.mxu0 %v854
        %1385 = vmatprep.subr.mxu0 0.0
        %1386 = vmatpush1.msra.mxu0 0.0
        %1387 = vmatprep.subr.mxu0 0.0
        %1388 = vmatpush1.msra.mxu0 0.0
        %1389 = vmatprep.subr.mxu0 0.0
        %1390 = vmatpush1.msra.mxu0 0.0
        %1391 = vmatprep.subr.mxu0 0.0
        %1392 = vmatpush1.msra.mxu0 0.0
        %1393 = vmatprep.subr.mxu0 0.0
        %1394 = vmatpush1.msra.mxu0 0.0
        %1395 = vmatprep.subr.mxu0 0.0
        %1396 = vmatpush1.msra.mxu0 0.0
        %1397 = vmatprep.subr.mxu0 0.0
        %1398 = vmatpush1.msra.mxu0 0.0
        %1399 = vmatprep.subr.mxu0 0.0
        %1400 = vmatpush1.msra.mxu0 0.0
        %1401 = vmatprep.subr.mxu0 0.0
        %1402 = vmatpush1.msra.mxu0 0.0
        %1403 = vmatprep.subr.mxu0 0.0
        %1404 = vmatpush1.msra.mxu0 0.0
        %1405 = vmatprep.subr.mxu0 0.0
        %1406 = vmatpush1.msra.mxu0 0.0
        %1407 = vmatprep.subr.mxu0 0.0
        %1408 = vmatpush1.msra.mxu0 0.0
        %1409 = vmatprep.subr.mxu0 0.0
        %1410 = vmatpush1.msra.mxu0 0.0
        %1411 = vmatprep.subr.mxu0 0.0
        %1412 = vmatpush1.msra.mxu0 0.0
        %1413 = vmatprep.subr.mxu0 0.0
        %1414 = vmatpush1.msra.mxu0 0.0
        %1415 = vmatprep.subr.mxu0 0.0
        %1416 = vmatpush1.msra.mxu0 0.0
        %1417 = vmatprep.subr.mxu0 0.0
        %1418 = vmatpush1.msra.mxu0 0.0
        %1419 = vmatprep.subr.mxu0 0.0
        %1420 = vmatpush1.msra.mxu0 0.0
        %1421 = vmatprep.subr.mxu0 0.0
        %1422 = vmatpush1.msra.mxu0 0.0
        %1423 = vmatprep.subr.mxu0 0.0
        %1424 = vmatpush1.msra.mxu0 0.0
        %1425 = vmatprep.subr.mxu0 0.0
        %1426 = vmatpush1.msra.mxu0 0.0
        %1427 = vmatprep.subr.mxu0 0.0
        %1428 = vmatpush1.msra.mxu0 0.0
        %1429 = vmatprep.subr.mxu0 0.0
        %1430 = vmatpush1.msra.mxu0 0.0
        %1431 = vmatprep.subr.mxu0 0.0
        %1432 = vmatpush1.msra.mxu0 0.0
        %1433 = vmatprep.subr.mxu0 0.0
        %1434 = vmatpush1.msra.mxu0 0.0
        %1435 = vmatprep.subr.mxu0 0.0
        %1436 = vmatpush1.msra.mxu0 0.0
        %1437 = vmatprep.subr.mxu0 0.0
        %1438 = vmatpush1.msra.mxu0 0.0
        %1439 = vmatprep.subr.mxu0 0.0
        %1440 = vmatpush1.msra.mxu0 0.0
        %1441 = vmatprep.subr.mxu0 0.0
        %1442 = vmatpush1.msra.mxu0 0.0
        %1443 = vmatprep.subr.mxu0 0.0
        %1444 = vmatpush1.msra.mxu0 0.0
        %1445 = vmatprep.mubr.f32.mxu0 0.0
        %1446 = vmatmul.mubr.f32.gmra.mrb[0].mxu0 %v1376
        %v1447 = vpop.f32.mrb[0].mxu0
        %v1448 = vadd.f32 0.0, %v1447
        %v1449 = vpop.f32.mrb[0].mxu0
        %1450 = vmatprep.mubr.f32.mxu0 0.0
        %1451 = vmatmul.mubr.f32.gmra.mrb[0].mxu0 %v1379
        %v1452 = vpop.f32.mrb[0].mxu0
        %v1453 = vadd.f32 0.0, %v1452
        %v1454 = vpop.f32.mrb[0].mxu0
        %1455 = vdwg.mxu0
        %v1457 = vsel %vm857, %v1290, 0
        %v1460 = vsel %vm857, %v1291, 0
        %1462 = vmatprep.subr.mxu0 0.0
        %1463 = vmatpush1.msra.mxu0 %v787
        %1464 = vmatprep.subr.mxu0 0.0
        %1465 = vmatpush1.msra.mxu0 %v855
        %1466 = vmatprep.subr.mxu0 0.0
        %1467 = vmatpush1.msra.mxu0 0.0
        %1468 = vmatprep.subr.mxu0 0.0
        %1469 = vmatpush1.msra.mxu0 0.0
        %1470 = vmatprep.subr.mxu0 0.0
        %1471 = vmatpush1.msra.mxu0 0.0
        %1472 = vmatprep.subr.mxu0 0.0
        %1473 = vmatpush1.msra.mxu0 0.0
        %1474 = vmatprep.subr.mxu0 0.0
        %1475 = vmatpush1.msra.mxu0 0.0
        %1476 = vmatprep.subr.mxu0 0.0
        %1477 = vmatpush1.msra.mxu0 0.0
        %1478 = vmatprep.subr.mxu0 0.0
        %1479 = vmatpush1.msra.mxu0 0.0
        %1480 = vmatprep.subr.mxu0 0.0
        %1481 = vmatpush1.msra.mxu0 0.0
        %1482 = vmatprep.subr.mxu0 0.0
        %1483 = vmatpush1.msra.mxu0 0.0
        %1484 = vmatprep.subr.mxu0 0.0
        %1485 = vmatpush1.msra.mxu0 0.0
        %1486 = vmatprep.subr.mxu0 0.0
        %1487 = vmatpush1.msra.mxu0 0.0
        %1488 = vmatprep.subr.mxu0 0.0
        %1489 = vmatpush1.msra.mxu0 0.0
        %1490 = vmatprep.subr.mxu0 0.0
        %1491 = vmatpush1.msra.mxu0 0.0
        %1492 = vmatprep.subr.mxu0 0.0
        %1493 = vmatpush1.msra.mxu0 0.0
        %1494 = vmatprep.subr.mxu0 0.0
        %1495 = vmatpush1.msra.mxu0 0.0
        %1496 = vmatprep.subr.mxu0 0.0
        %1497 = vmatpush1.msra.mxu0 0.0
        %1498 = vmatprep.subr.mxu0 0.0
        %1499 = vmatpush1.msra.mxu0 0.0
        %1500 = vmatprep.subr.mxu0 0.0
        %1501 = vmatpush1.msra.mxu0 0.0
        %1502 = vmatprep.subr.mxu0 0.0
        %1503 = vmatpush1.msra.mxu0 0.0
        %1504 = vmatprep.subr.mxu0 0.0
        %1505 = vmatpush1.msra.mxu0 0.0
        %1506 = vmatprep.subr.mxu0 0.0
        %1507 = vmatpush1.msra.mxu0 0.0
        %1508 = vmatprep.subr.mxu0 0.0
        %1509 = vmatpush1.msra.mxu0 0.0
        %1510 = vmatprep.subr.mxu0 0.0
        %1511 = vmatpush1.msra.mxu0 0.0
        %1512 = vmatprep.subr.mxu0 0.0
        %1513 = vmatpush1.msra.mxu0 0.0
        %1514 = vmatprep.subr.mxu0 0.0
        %1515 = vmatpush1.msra.mxu0 0.0
        %1516 = vmatprep.subr.mxu0 0.0
        %1517 = vmatpush1.msra.mxu0 0.0
        %1518 = vmatprep.subr.mxu0 0.0
        %1519 = vmatpush1.msra.mxu0 0.0
        %1520 = vmatprep.subr.mxu0 0.0
        %1521 = vmatpush1.msra.mxu0 0.0
        %1522 = vmatprep.subr.mxu0 0.0
        %1523 = vmatpush1.msra.mxu0 0.0
        %1524 = vmatprep.subr.mxu0 0.0
        %1525 = vmatpush1.msra.mxu0 0.0
        %1526 = vmatprep.mubr.f32.mxu0 0.0
        %1527 = vmatmul.mubr.f32.gmra.mrb[0].mxu0 %v1457
        %v1528 = vpop.f32.mrb[0].mxu0
        %v1529 = vadd.f32 0.0, %v1528
        %v1530 = vpop.f32.mrb[0].mxu0
        %1531 = vmatprep.mubr.f32.mxu0 0.0
        %1532 = vmatmul.mubr.f32.gmra.mrb[0].mxu0 %v1460
        %v1533 = vpop.f32.mrb[0].mxu0
        %v1534 = vadd.f32 0.0, %v1533
        %v1535 = vpop.f32.mrb[0].mxu0
        %1536 = vdwg.mxu0
        %v1538 = vsel %vm857, %v1292, 0
        %v1541 = vsel %vm857, %v1293, 0
        %1543 = vmatprep.subr.mxu0 0.0
        %1544 = vmatpush1.msra.mxu0 %v788
        %1545 = vmatprep.subr.mxu0 0.0
        %1546 = vmatpush1.msra.mxu0 %v856
        %1547 = vmatprep.subr.mxu0 0.0
        %1548 = vmatpush1.msra.mxu0 0.0
        %1549 = vmatprep.subr.mxu0 0.0
        %1550 = vmatpush1.msra.mxu0 0.0
        %1551 = vmatprep.subr.mxu0 0.0
        %1552 = vmatpush1.msra.mxu0 0.0
        %1553 = vmatprep.subr.mxu0 0.0
        %1554 = vmatpush1.msra.mxu0 0.0
        %1555 = vmatprep.subr.mxu0 0.0
        %1556 = vmatpush1.msra.mxu0 0.0
        %1557 = vmatprep.subr.mxu0 0.0
        %1558 = vmatpush1.msra.mxu0 0.0
        %1559 = vmatprep.subr.mxu0 0.0
        %1560 = vmatpush1.msra.mxu0 0.0
        %1561 = vmatprep.subr.mxu0 0.0
        %1562 = vmatpush1.msra.mxu0 0.0
        %1563 = vmatprep.subr.mxu0 0.0
        %1564 = vmatpush1.msra.mxu0 0.0
        %1565 = vmatprep.subr.mxu0 0.0
        %1566 = vmatpush1.msra.mxu0 0.0
        %1567 = vmatprep.subr.mxu0 0.0
        %1568 = vmatpush1.msra.mxu0 0.0
        %1569 = vmatprep.subr.mxu0 0.0
        %1570 = vmatpush1.msra.mxu0 0.0
        %1571 = vmatprep.subr.mxu0 0.0
        %1572 = vmatpush1.msra.mxu0 0.0
        %1573 = vmatprep.subr.mxu0 0.0
        %1574 = vmatpush1.msra.mxu0 0.0
        %1575 = vmatprep.subr.mxu0 0.0
        %1576 = vmatpush1.msra.mxu0 0.0
        %1577 = vmatprep.subr.mxu0 0.0
        %1578 = vmatpush1.msra.mxu0 0.0
        %1579 = vmatprep.subr.mxu0 0.0
        %1580 = vmatpush1.msra.mxu0 0.0
        %1581 = vmatprep.subr.mxu0 0.0
        %1582 = vmatpush1.msra.mxu0 0.0
        %1583 = vmatprep.subr.mxu0 0.0
        %1584 = vmatpush1.msra.mxu0 0.0
        %1585 = vmatprep.subr.mxu0 0.0
        %1586 = vmatpush1.msra.mxu0 0.0
        %1587 = vmatprep.subr.mxu0 0.0
        %1588 = vmatpush1.msra.mxu0 0.0
        %1589 = vmatprep.subr.mxu0 0.0
        %1590 = vmatpush1.msra.mxu0 0.0
        %1591 = vmatprep.subr.mxu0 0.0
        %1592 = vmatpush1.msra.mxu0 0.0
        %1593 = vmatprep.subr.mxu0 0.0
        %1594 = vmatpush1.msra.mxu0 0.0
        %1595 = vmatprep.subr.mxu0 0.0
        %1596 = vmatpush1.msra.mxu0 0.0
        %1597 = vmatprep.subr.mxu0 0.0
        %1598 = vmatpush1.msra.mxu0 0.0
        %1599 = vmatprep.subr.mxu0 0.0
        %1600 = vmatpush1.msra.mxu0 0.0
        %1601 = vmatprep.subr.mxu0 0.0
        %1602 = vmatpush1.msra.mxu0 0.0
        %1603 = vmatprep.subr.mxu0 0.0
        %1604 = vmatpush1.msra.mxu0 0.0
        %1605 = vmatprep.subr.mxu0 0.0
        %1606 = vmatpush1.msra.mxu0 0.0
        %1607 = vmatprep.mubr.f32.mxu0 0.0
        %1608 = vmatmul.mubr.f32.gmra.mrb[0].mxu0 %v1538
        %v1609 = vpop.f32.mrb[0].mxu0
        %v1610 = vadd.f32 0.0, %v1609
        %v1611 = vpop.f32.mrb[0].mxu0
        %1612 = vmatprep.mubr.f32.mxu0 0.0
        %1613 = vmatmul.mubr.f32.gmra.mrb[0].mxu0 %v1541
        %v1614 = vpop.f32.mrb[0].mxu0
        %v1615 = vadd.f32 0.0, %v1614
        %v1616 = vpop.f32.mrb[0].mxu0
        %1617 = vdwg.mxu0
        %v1618 = vcombine.low %v1367, %v1529
        %v1619 = vcombine.high %v1367, %v1529
        %v1621 = vunpack.c.l.s4 1983009808
        %v1622 = vunpack.c.0.s8 %v1621
        %v1623 = vlaneseq
        %v1624 = vshrl.u32 %v1623, 7
        %v1625 = vsub.s32 %v1622, %v1624
        %v1626 = vrot.slane %v1618, %v1625
        %v1628 = vunpack.c.l.s4 1983009808
        %v1629 = vunpack.c.0.s8 %v1628
        %v1630 = vlaneseq
        %v1631 = vshrl.u32 %v1630, 7
        %v1632 = vsub.s32 %v1629, %v1631
        %v1633 = vrot.slane %v1619, %v1632
        %v1634 = vcombine.low %v1448, %v1610
        %v1635 = vcombine.high %v1448, %v1610
        %v1637 = vunpack.c.l.s4 1983009808
        %v1638 = vunpack.c.0.s8 %v1637
        %v1639 = vlaneseq
        %v1640 = vshrl.u32 %v1639, 7
        %v1641 = vsub.s32 %v1638, %v1640
        %v1642 = vrot.slane %v1634, %v1641
        %v1644 = vunpack.c.l.s4 1983009808
        %v1645 = vunpack.c.0.s8 %v1644
        %v1646 = vlaneseq
        %v1647 = vshrl.u32 %v1646, 7
        %v1648 = vsub.s32 %v1645, %v1647
        %v1649 = vrot.slane %v1635, %v1648
        %v1650 = vcombine.low %v1626, %v1642
        %v1651 = vcombine.high %v1626, %v1642
        %v1653 = vunpack.c.l.s4 1934713408
        %v1654 = vunpack.c.0.s8 %v1653
        %v1655 = vlaneseq
        %v1656 = vshrl.u32 %v1655, 7
        %v1657 = vsub.s32 %v1654, %v1656
        %v1658 = vrot.slane %v1650, %v1657
        %v1660 = vunpack.c.l.s4 1934713408
        %v1661 = vunpack.c.0.s8 %v1660
        %v1662 = vlaneseq
        %v1663 = vshrl.u32 %v1662, 7
        %v1664 = vsub.s32 %v1661, %v1663
        %v1665 = vrot.slane %v1651, %v1664
        %v1666 = vcombine.low %v1633, %v1649
        %v1667 = vcombine.high %v1633, %v1649
        %v1669 = vunpack.c.l.s4 1934713408
        %v1670 = vunpack.c.0.s8 %v1669
        %v1671 = vlaneseq
        %v1672 = vshrl.u32 %v1671, 7
        %v1673 = vsub.s32 %v1670, %v1672
        %v1674 = vrot.slane %v1666, %v1673
        %v1676 = vunpack.c.l.s4 1934713408
        %v1677 = vunpack.c.0.s8 %v1676
        %v1678 = vlaneseq
        %v1679 = vshrl.u32 %v1678, 7
        %v1680 = vsub.s32 %v1677, %v1679
        %v1681 = vrot.slane %v1667, %v1680
        %v1682 = vcombine.high %v1658, 0.0
        %v1683 = vcombine.high %v1665, 0.0
        %v1684 = vcombine.high %v1674, 0.0
        %v1685 = vcombine.high %v1681, 0.0
        %v1686 = vcombine.low %v1372, %v1534
        %v1687 = vcombine.high %v1372, %v1534
        %v1689 = vunpack.c.l.s4 1983009808
        %v1690 = vunpack.c.0.s8 %v1689
        %v1691 = vlaneseq
        %v1692 = vshrl.u32 %v1691, 7
        %v1693 = vsub.s32 %v1690, %v1692
        %v1694 = vrot.slane %v1686, %v1693
        %v1696 = vunpack.c.l.s4 1983009808
        %v1697 = vunpack.c.0.s8 %v1696
        %v1698 = vlaneseq
        %v1699 = vshrl.u32 %v1698, 7
        %v1700 = vsub.s32 %v1697, %v1699
        %v1701 = vrot.slane %v1687, %v1700
        %v1702 = vcombine.low %v1453, %v1615
        %v1703 = vcombine.high %v1453, %v1615
        %v1705 = vunpack.c.l.s4 1983009808
        %v1706 = vunpack.c.0.s8 %v1705
        %v1707 = vlaneseq
        %v1708 = vshrl.u32 %v1707, 7
        %v1709 = vsub.s32 %v1706, %v1708
        %v1710 = vrot.slane %v1702, %v1709
        %v1712 = vunpack.c.l.s4 1983009808
        %v1713 = vunpack.c.0.s8 %v1712
        %v1714 = vlaneseq
        %v1715 = vshrl.u32 %v1714, 7
        %v1716 = vsub.s32 %v1713, %v1715
        %v1717 = vrot.slane %v1703, %v1716
        %v1718 = vcombine.low %v1694, %v1710
        %v1719 = vcombine.high %v1694, %v1710
        %v1721 = vunpack.c.l.s4 1934713408
        %v1722 = vunpack.c.0.s8 %v1721
        %v1723 = vlaneseq
        %v1724 = vshrl.u32 %v1723, 7
        %v1725 = vsub.s32 %v1722, %v1724
        %v1726 = vrot.slane %v1718, %v1725
        %v1728 = vunpack.c.l.s4 1934713408
        %v1729 = vunpack.c.0.s8 %v1728
        %v1730 = vlaneseq
        %v1731 = vshrl.u32 %v1730, 7
        %v1732 = vsub.s32 %v1729, %v1731
        %v1733 = vrot.slane %v1719, %v1732
        %v1734 = vcombine.low %v1701, %v1717
        %v1735 = vcombine.high %v1701, %v1717
        %v1737 = vunpack.c.l.s4 1934713408
        %v1738 = vunpack.c.0.s8 %v1737
        %v1739 = vlaneseq
        %v1740 = vshrl.u32 %v1739, 7
        %v1741 = vsub.s32 %v1738, %v1740
        %v1742 = vrot.slane %v1734, %v1741
        %v1744 = vunpack.c.l.s4 1934713408
        %v1745 = vunpack.c.0.s8 %v1744
        %v1746 = vlaneseq
        %v1747 = vshrl.u32 %v1746, 7
        %v1748 = vsub.s32 %v1745, %v1747
        %v1749 = vrot.slane %v1735, %v1748
        %v1750 = vcombine.high %v1726, 0.0
        %v1751 = vcombine.high %v1733, 0.0
        %v1752 = vcombine.high %v1742, 0.0
        %v1753 = vcombine.high %v1749, 0.0
        %1755 = vrot.lane.b32.xlu0 %v1682, 16
        %v1756 = vpop.permute.xlu0 %1755
        %1759 = vrot.lane.b32.xlu0 %v1665, 32
        %v1760 = vpop.permute.xlu0 %1759
        %1763 = vrot.lane.b32.xlu0 %v1683, 48
        %v1764 = vpop.permute.xlu0 %1763
        %1767 = vrot.lane.b32.xlu0 %v1674, 64
        %v1768 = vpop.permute.xlu0 %1767
        %1771 = vrot.lane.b32.xlu0 %v1684, 80
        %v1772 = vpop.permute.xlu0 %1771
        %1775 = vrot.lane.b32.xlu0 %v1681, 96
        %v1776 = vpop.permute.xlu0 %1775
        %1779 = vrot.lane.b32.xlu0 %v1685, 112
        %v1780 = vpop.permute.xlu0 %1779
        %1783 = vrot.lane.b32.xlu0 %v1750, 16
        %v1784 = vpop.permute.xlu0 %1783
        %1787 = vrot.lane.b32.xlu0 %v1733, 32
        %v1788 = vpop.permute.xlu0 %1787
        %1791 = vrot.lane.b32.xlu0 %v1751, 48
        %v1792 = vpop.permute.xlu0 %1791
        %1795 = vrot.lane.b32.xlu0 %v1742, 64
        %v1796 = vpop.permute.xlu0 %1795
        %1799 = vrot.lane.b32.xlu0 %v1752, 80
        %v1800 = vpop.permute.xlu0 %1799
        %1803 = vrot.lane.b32.xlu0 %v1749, 96
        %v1804 = vpop.permute.xlu0 %1803
        %1807 = vrot.lane.b32.xlu0 %v1753, 112
        %v1808 = vpop.permute.xlu0 %1807
        %v1810 = vsel %vm857, %v1658, %v1756
        %vm1811 = vcmask 261120
        %v1812 = vsel %vm1811, %v1810, %v1760
        %vm1813 = vcmask 392192
        %v1814 = vsel %vm1813, %v1812, %v1764
        %vm1815 = vcmask 523264
        %v1816 = vsel %vm1815, %v1814, %v1768
        %vm1817 = vcmask 654336
        %v1818 = vsel %vm1817, %v1816, %v1772
        %vm1819 = vcmask 785408
        %v1820 = vsel %vm1819, %v1818, %v1776
        %vm1821 = vcmask 916480
        %v1822 = vsel %vm1821, %v1820, %v1780
        %v1823 = vsel %vm857, %v1726, %v1784
        %v1824 = vsel %vm1811, %v1823, %v1788
        %v1825 = vsel %vm1813, %v1824, %v1792
        %v1826 = vsel %vm1815, %v1825, %v1796
        %v1827 = vsel %vm1817, %v1826, %v1800
        %v1828 = vsel %vm1819, %v1827, %v1804
        %v1829 = vsel %vm1821, %v1828, %v1808
        %v1830 = vld [vmem:[%s3] sm:$0xf]
        %v1831 = vld [vmem:[%s4] sm:$0xf]
        %1833 = vset.pattern.permute.xlu0 0
        %1834 = vperm.xlu0 %1833, %v1831
        %v1835 = vpop.permute.xlu0 %1834
        %v1838 = vsel %vm240, %v1830, 0
        %v1841 = vsel %vm247, %v1822, 0
        %v1844 = vsel %vm247, %v1829, 0
        %1846 = vmatprep.subr.mxu0 %v1844
        %1847 = vmatpush1.msra.mxu0 %v1841
        %1848 = vmatprep.subr.mxu0 0.0
        %1849 = vmatpush1.msra.mxu0 0.0
        %1850 = vmatprep.subr.mxu0 0.0
        %1851 = vmatpush1.msra.mxu0 0.0
        %1852 = vmatprep.subr.mxu0 0.0
        %1853 = vmatpush1.msra.mxu0 0.0
        %1854 = vmatprep.subr.mxu0 0.0
        %1855 = vmatpush1.msra.mxu0 0.0
        %1856 = vmatprep.subr.mxu0 0.0
        %1857 = vmatpush1.msra.mxu0 0.0
        %1858 = vmatprep.subr.mxu0 0.0
        %1859 = vmatpush1.msra.mxu0 0.0
        %1860 = vmatprep.subr.mxu0 0.0
        %1861 = vmatpush1.msra.mxu0 0.0
        %1862 = vmatprep.subr.mxu0 0.0
        %1863 = vmatpush1.msra.mxu0 0.0
        %1864 = vmatprep.subr.mxu0 0.0
        %1865 = vmatpush1.msra.mxu0 0.0
        %1866 = vmatprep.subr.mxu0 0.0
        %1867 = vmatpush1.msra.mxu0 0.0
        %1868 = vmatprep.subr.mxu0 0.0
        %1869 = vmatpush1.msra.mxu0 0.0
        %1870 = vmatprep.subr.mxu0 0.0
        %1871 = vmatpush1.msra.mxu0 0.0
        %1872 = vmatprep.subr.mxu0 0.0
        %1873 = vmatpush1.msra.mxu0 0.0
        %1874 = vmatprep.subr.mxu0 0.0
        %1875 = vmatpush1.msra.mxu0 0.0
        %1876 = vmatprep.subr.mxu0 0.0
        %1877 = vmatpush1.msra.mxu0 0.0
        %1878 = vmatprep.subr.mxu0 0.0
        %1879 = vmatpush1.msra.mxu0 0.0
        %1880 = vmatprep.subr.mxu0 0.0
        %1881 = vmatpush1.msra.mxu0 0.0
        %1882 = vmatprep.subr.mxu0 0.0
        %1883 = vmatpush1.msra.mxu0 0.0
        %1884 = vmatprep.subr.mxu0 0.0
        %1885 = vmatpush1.msra.mxu0 0.0
        %1886 = vmatprep.subr.mxu0 0.0
        %1887 = vmatpush1.msra.mxu0 0.0
        %1888 = vmatprep.subr.mxu0 0.0
        %1889 = vmatpush1.msra.mxu0 0.0
        %1890 = vmatprep.subr.mxu0 0.0
        %1891 = vmatpush1.msra.mxu0 0.0
        %1892 = vmatprep.subr.mxu0 0.0
        %1893 = vmatpush1.msra.mxu0 0.0
        %1894 = vmatprep.subr.mxu0 0.0
        %1895 = vmatpush1.msra.mxu0 0.0
        %1896 = vmatprep.subr.mxu0 0.0
        %1897 = vmatpush1.msra.mxu0 0.0
        %1898 = vmatprep.subr.mxu0 0.0
        %1899 = vmatpush1.msra.mxu0 0.0
        %1900 = vmatprep.subr.mxu0 0.0
        %1901 = vmatpush1.msra.mxu0 0.0
        %1902 = vmatprep.subr.mxu0 0.0
        %1903 = vmatpush1.msra.mxu0 0.0
        %1904 = vmatprep.subr.mxu0 0.0
        %1905 = vmatpush1.msra.mxu0 0.0
        %1906 = vmatprep.subr.mxu0 0.0
        %1907 = vmatpush1.msra.mxu0 0.0
        %1908 = vmatprep.subr.mxu0 0.0
        %1909 = vmatpush1.msra.mxu0 0.0
        %1910 = vmatprep.mubr.f32.mxu0 0.0
        %1911 = vmatmul.mubr.f32.gmra.mrb[0].mxu0 %v1838
        %v1912 = vpop.f32.mrb[0].mxu0
        %v1913 = vadd.f32 %v1835, %v1912
        %v1914 = vpop.f32.mrb[0].mxu0
        %v1915 = vadd.f32 %v1835, %v1914
        %1916 = vdwg.mxu0
        %v1919 = vcombine.low %v1913, %v1915
        %1921 = vst [vmem:[%s217] sm:$0xff] %v1919
        %s1922 = sand.u32 %s137, 1
        %s1923 = scalar_lea.sflag [#allocation3], %s1922
        %s1924 = sand.u32 %s137, 1
        %s1925 = smul.addr %s1924, 8
        %s1926 = scalar_lea.vmem [#allocation2], %s1925
        // Predicated region
        $region41: #{tpu_custom_call.1} parent=39 // pred_check
          %p1927 = pneg %p147
        $region42: #{tpu_custom_call.1} parent=39 // pred_check_branch
          %1929 = sbr.rel (%p1927) target = $region44
        $region43: #{tpu_custom_call.1} parent=39 // pred_region
          %s1931 = ssub.s32 128, 128
          %1932 = vsyncadd %s1923, %s1931
          %s1933 = smul.addr %s19, 2
          %s1934 = smul.addr %s1933, 64
          %s1935 = scalar_lea.hbm %s5, %s1934
          %s1937 = sshll.u32 %s1926, 4
          %s1938 = int_to_ptr.vmem [resolvable:$true] %s1937
          %1940 = dma.vmem_to_hbm [thread:$0]  %s1938, 128, %s1935, %s1923
        $region44: #{tpu_custom_call.1} parent=39 // pred_fallthru
          _
      $region40: #{tpu_custom_call.1} parent=5 // pred_fallthru
        _
      %p1941 = scmp.le.s32.totalorder 2, %s14
      // Predicated region
      $region45: #{tpu_custom_call.1} parent=5 // pred_check
        %p1942 = pneg %p1941
      $region46: #{tpu_custom_call.1} parent=5 // pred_check_branch
        %1944 = sbr.rel (%p1942) target = $region48
      $region47: #{tpu_custom_call.1} parent=5 // pred_region
        %s1945 = ssub.s32 %s14, 2
        // Predicated region
        $region49: #{tpu_custom_call.1} parent=47 // pred_check
          %p1946 = pneg %p153
        $region50: #{tpu_custom_call.1} parent=47 // pred_check_branch
          %1948 = sbr.rel (%p1946) target = $region52
        $region51: #{tpu_custom_call.1} parent=47 // pred_region
          %s1949 = sand.u32 %s138, 1
          %s1950 = scalar_lea.sflag [#allocation3], %s1949
          %s1951 = sand.u32 %s138, 1
          %s1952 = smul.addr %s1951, 8
          %s1953 = scalar_lea.vmem [#allocation2], %s1952
          %1954 = dma.done %s1950, 128
        $region52: #{tpu_custom_call.1} parent=47 // pred_fallthru
          _
      $region48: #{tpu_custom_call.1} parent=5 // pred_fallthru
        _
    $region6: #{tpu_custom_call.1} parent=1 // loop_footer
      %s18 = sadd.s32 1, %s14
    $region7: #{tpu_custom_call.1} parent=1 // loop_footer_branch
      %13 = sbr.rel target = $region3
    $region8: #{tpu_custom_call.1} parent=1 // loop_exit
      _
    %1955 = vsyncpa [#allocation3], 1
    %s1956 = scalar_lea.sflag [#allocation3], 1
    %1957 = vsyncpa %s1956, 1

</llo_original>
